<compile_context>
chip_gen: v5e
topology: v5e:2x2
jax: 0.10.0
libtpu: 0.0.40
codegen_flags: <defaults>
</compile_context>

<pallas_src>
import functools

import numpy as np
import jax
import jax.numpy as jnp
from jax.experimental import pallas as pl
from jax.experimental.pallas import tpu as pltpu

BN_EPS = 1e-5

_VMEM = pl.BlockSpec(memory_space=pltpu.MemorySpace.VMEM)


# ----------------------------------------------------------------------------
# Host-side (numpy) weight preprocessing into kernel-ready, lane-dense arrays.
# ----------------------------------------------------------------------------
def _row_block_conv_weight(w, W):
    """(3,3,Cin,Cout) conv weight -> (3, W*Cin, W*Cout) per-kernel-row block weight.

    The 3 width taps (dw) and the 'same'-padding edge truncation are folded into
    the block structure, so each kernel row of the 3x3 conv becomes one matmul
    (H, W*Cin) @ (W*Cin, W*Cout)."""
    _, _, ci, co = w.shape
    wblk = np.zeros((3, W * ci, W * co), np.float32)
    for dh in range(3):
        for dw in range(3):
            for wo in range(W):
                wi = wo + dw - 1
                if 0 <= wi < W:
                    wblk[dh, wi * ci:(wi + 1) * ci, wo * co:(wo + 1) * co] = w[dh, dw]
    return wblk


def _block_diag_1x1_weight(wres, W):
    """(Cin,Cout) 1x1-conv weight -> (W*Cin, W*Cout) block-diagonal weight."""
    ci, co = wres.shape
    blk = np.zeros((W * ci, W * co), np.float32)
    for wpos in range(W):
        blk[wpos * ci:(wpos + 1) * ci, wpos * co:(wpos + 1) * co] = wres
    return blk


def _channel_pool_matrix(W, C, n_elems):
    """(W*C, W*C) matrix: right-multiplying a (1, W*C) lane-sum by it yields the
    per-channel mean broadcast back to every lane of that channel."""
    ch = np.arange(W * C) % C
    return (ch[:, None] == ch[None, :]).astype(np.float32) / float(n_elems)


def prepare_block_params(layer_params, N, H, W):
    """Build kernel-ready parameters.

    Conv biases are intentionally dropped: training-mode (batch-statistics)
    BatchNorm subtracts the per-channel mean, so pre-BN per-channel biases cancel
    exactly.  Layer-0 input channels are zero-padded up to out_channels so every
    matmul operand is a full W*C lane slab."""
    L = len(layer_params)
    w1_first = np.asarray(layer_params[0]["w1"], np.float32)
    cin0, cout = w1_first.shape[2], w1_first.shape[3]
    assert cin0 <= cout, "TODO(synk): general cin0 > cout lane-padding path"
    C = cout
    WC = W * C
    n_elems = N * H * W
    am0 = "wres" in layer_params[0]            # base_layer.apply_mapping (layer 0)

    def _pad_cin(w):                            # (3,3,ci,co) -> (3,3,C,co)
        ci = w.shape[2]
        if ci < C:
            w = np.concatenate(
                [w, np.zeros((3, 3, C - ci, w.shape[3]), np.float32)], axis=2)
        return w

    def _to_bf16(a):
        return jnp.asarray(a, jnp.float32).astype(jnp.bfloat16)

    # --- Layer 0 weights: resident in VMEM for the whole call (bf16 halves DMA).
    p0 = layer_params[0]
    vmem_args = [
        _to_bf16(_row_block_conv_weight(_pad_cin(np.asarray(p0["w1"], np.float32)), W)),
        _to_bf16(_row_block_conv_weight(_pad_cin(np.asarray(p0["w2"], np.float32)), W)),
    ]
    if am0:
        wres = np.asarray(p0["wres"], np.float32)
        if cin0 < C:
            wres = np.concatenate([wres, np.zeros((C - cin0, C), np.float32)], axis=0)
        vmem_args.append(_to_bf16(_block_diag_1x1_weight(wres, W)))

    # --- Shared (deduped) channel-pool matrix: all layers have the same cout. ---
    vmem_args.append(jnp.asarray(_channel_pool_matrix(W, C, n_elems)))        # f32

    # --- All BN gamma/beta rows packed into one lane-tiled (L, 4, W*C) array. ---
    gb = np.zeros((L, 4, WC), np.float32)
    for li, p in enumerate(layer_params):
        for r, name in enumerate(("g1", "be1", "g2", "be2")):
            gb[li, r] = np.tile(np.asarray(p[name], np.float32), W)
    vmem_args.append(jnp.asarray(gb))

    # --- Layers >= 1 (cout->cout, identity skip): stacked in HBM and streamed ---
    #     by the kernel with manual double-buffered DMA (hidden behind compute).
    wstack = None
    if L > 1:
        ws = np.zeros((L - 1, 2, 3, WC, WC), np.float32)
        for li in range(1, L):
            p = layer_params[li]
            assert "wres" not in p, "layers >= 1 must have in_ch == out_ch"
            ws[li - 1, 0] = _row_block_conv_weight(np.asarray(p["w1"], np.float32), W)
            ws[li - 1, 1] = _row_block_conv_weight(np.asarray(p["w2"], np.float32), W)
        wstack = _to_bf16(ws)

    return {"L": L, "C": C, "am0": am0,
            "vmem_args": tuple(vmem_args), "wstack": wstack}


# ----------------------------------------------------------------------------
# Kernel
# ----------------------------------------------------------------------------
def _block_kernel(*refs, N, H, WC, L, am0):
    f32 = jnp.float32
    HP = H + 2
    has_stack = L > 1

    it = iter(refs)
    x_ref = next(it)
    w1_0_ref = next(it)
    w2_0_ref = next(it)
    wres0_ref = next(it) if am0 else None
    pc_ref = next(it)
    gb_ref = next(it)
    wstack_ref = next(it) if has_stack else None
    out_ref = next(it)
    xpad_ref = next(it)
    hpad_ref = next(it)
    wbuf_ref = next(it) if has_stack else None
    wsem_ref = next(it) if has_stack else None

    # ---- Kick off layer-1's weight DMA immediately: it overlaps with the halo
    #      init, the input copy and all of layer-0's compute. -------------------
    inflight = {}
    nbuf = wbuf_ref.shape[0] if has_stack else 1
    if has_stack:
        cp = pltpu.make_async_copy(wstack_ref.at[0], wbuf_ref.at[0], wsem_ref.at[0])
        cp.start()
        inflight[1] = cp

    # ---- Zero ONLY the halo rows (top/bottom of each image), once; interior
    #      rows are always fully overwritten. -----------------------------------
    zrow = jnp.zeros((1, WC), f32)
    for n in range(N):
        base = n * HP
        xpad_ref[pl.ds(base, 1), :] = zrow
        xpad_ref[pl.ds(base + H + 1, 1), :] = zrow
        hpad_ref[pl.ds(base, 1), :] = zrow
        hpad_ref[pl.ds(base + H + 1, 1), :] = zrow

    # ---- Lane-dense input -> xpad interior rows. -------------------------------
    for n in range(N):
        xpad_ref[pl.ds(n * HP + 1, H), :] = x_ref[pl.ds(n * H, H), :]

    pc = pc_ref[...]                                   # (WC, WC) f32, shared

    def conv3x3_all(pad_ref, wrow):
        """3x3 conv for all N images: 3 MXU matmuls per image (one per kernel
        row); width taps + 'same' padding live in the block weight.  dh-outer /
        image-inner so each weight row is loaded (and upcast) exactly once; the
        accumulator is initialized by the dh=0 matmul (no zero-fill)."""
        accs = [None] * N
        for dh in range(3):
            w = wrow(dh)                               # (WC, WC) f32
            for n in range(N):
                # TODO(synk): on v5e/v6e, accumulate the 3 taps inside the MXU
                # (pltpu.matmul_acc_lhs / matmul_pop) to drop the VALU adds.
                part = jnp.dot(pad_ref[pl.ds(n * HP + dh, H), :], w,
                               preferred_element_type=f32)
                accs[n] = part if dh == 0 else accs[n] + part
        return accs

    def bn_scale_shift(accs, g_row, b_row):
        """Training-mode BatchNorm folded to per-lane scale/shift rows.
        Single pass: sum(z) and sum(z*z) together; var = E[z^2] - mean^2 (safe
        here: conv biases are dropped so pre-BN means are small).  All
        statistics math stays in f32."""
        s = jnp.sum(accs[0], axis=0, keepdims=True)
        ss = jnp.sum(accs[0] * accs[0], axis=0, keepdims=True)
        for a in accs[1:]:
            s = s + jnp.sum(a, axis=0, keepdims=True)
            ss = ss + jnp.sum(a * a, axis=0, keepdims=True)
        mean = jnp.dot(s, pc, preferred_element_type=f32)    # per-channel mean
        ex2 = jnp.dot(ss, pc, preferred_element_type=f32)    # per-channel E[z^2]
        var = jnp.maximum(ex2 - mean * mean, 0.0)            # biased batch var
        scale = g_row * jax.lax.rsqrt(var + BN_EPS)
        shift = b_row - mean * scale
        return scale, shift

    for li in range(L):
        if li == 0:
            w1row = lambda dh: w1_0_ref[dh].astype(f32)
            w2row = lambda dh: w2_0_ref[dh].astype(f32)
            use_wres = am0
        else:
            slot = (li - 1) % nbuf
            inflight.pop(li).wait()                    # layer li's weights landed
            if li + 1 < L:                             # prefetch layer li+1
                nxt = li % nbuf
                cp = pltpu.make_async_copy(wstack_ref.at[li], wbuf_ref.at[nxt],
                                           wsem_ref.at[nxt])
                cp.start()
                inflight[li + 1] = cp
            w1row = lambda dh, s=slot: wbuf_ref[s, 0, dh].astype(f32)
            w2row = lambda dh, s=slot: wbuf_ref[s, 1, dh].astype(f32)
            use_wres = False                           # in_ch == out_ch -> identity

        gb = gb_ref[li]                                # (4, WC): g1, be1, g2, be2
        g1, be1, g2, be2 = gb[0:1], gb[1:2], gb[2:3], gb[3:4]

        # ---- conv1 -> BN1 -> ReLU, written straight into hpad's interior. ----
        accs1 = conv3x3_all(xpad_ref, w1row)
        sc1, sh1 = bn_scale_shift(accs1, g1, be1)
        for n in range(N):
            hpad_ref[pl.ds(n * HP + 1, H), :] = jnp.maximum(accs1[n] * sc1 + sh1, 0.0)

        # ---- conv2 + residual (learned 1x1 for layer 0, identity add after). --
        accs2 = conv3x3_all(hpad_ref, w2row)
        if use_wres:
            wres = wres0_ref[...].astype(f32)
            for n in range(N):
                accs2[n] = accs2[n] + jnp.dot(xpad_ref[pl.ds(n * HP + 1, H), :],
                                              wres, preferred_element_type=f32)
        else:
            for n in range(N):
                accs2[n] = accs2[n] + xpad_ref[pl.ds(n * HP + 1, H), :]

        # ---- BN2 -> ReLU, written to the output (last layer) or straight into
        #      the next layer's xpad interior (buffer reuse; halos stay zero). --
        sc2, sh2 = bn_scale_shift(accs2, g2, be2)
        for n in range(N):
            y = jnp.maximum(accs2[n] * sc2 + sh2, 0.0)
            if li == L - 1:
                out_ref[pl.ds(n * H, H), :] = y
            else:
                xpad_ref[pl.ds(n * HP + 1, H), :] = y


# ----------------------------------------------------------------------------
# Wrapper (PyTorch NCHW in / NCHW out)
# ----------------------------------------------------------------------------
def pallas_base_block(x_nchw, prepared):
    N, cin0, H, W = x_nchw.shape
    L, C, am0 = prepared["L"], prepared["C"], prepared["am0"]
    WC = W * C

    # NCHW -> lane-dense (N*H, W*C); pad the input channels up to C so every
    # activation slab is a full W*C (=128) lanes wide.
    x = jnp.transpose(x_nchw, (0, 2, 3, 1))                      # N,H,W,cin0
    if cin0 < C:
        x = jnp.pad(x, ((0, 0), (0, 0), (0, 0), (0, C - cin0)))
    x = x.reshape(N * H, WC)

    args = [x, *prepared["vmem_args"]]
    in_specs = [_VMEM] * len(args)
    scratch_shapes = [pltpu.VMEM((N * (H + 2), WC), jnp.float32),   # xpad (ping)
                      pltpu.VMEM((N * (H + 2), WC), jnp.float32)]   # hpad (pong)
    if prepared["wstack"] is not None:
        args.append(prepared["wstack"])
        in_specs.append(pl.BlockSpec(memory_space=pl.ANY))          # stays in HBM
        nbuf = 2 if L > 2 else 1
        scratch_shapes += [pltpu.VMEM((nbuf, 2, 3, WC, WC), jnp.bfloat16),
                           pltpu.SemaphoreType.DMA((nbuf,))]

    kernel = functools.partial(_block_kernel, N=N, H=H, WC=WC, L=L, am0=am0)
    out = pl.pallas_call(
        kernel,
        out_shape=jax.ShapeDtypeStruct((N * H, WC), jnp.float32),
        in_specs=in_specs,
        out_specs=_VMEM,
        scratch_shapes=scratch_shapes,
    )(*args)

    return jnp.transpose(out.reshape(N, H, W, C), (0, 3, 1, 2))     # -> NCHW


# ----------------------------------------------------------------------------
# Parameter init (mirrors the PyTorch module: conv biases, BN affine params;
# the 1x1 residual conv is used only when in_ch != out_ch, i.e. apply_mapping).
# ----------------------------------------------------------------------------
def init_layer_params(key, cin, cout):
    ks = jax.random.split(key, 10)
    p = {
        "w1": jax.random.normal(ks[0], (3, 3, cin, cout), jnp.float32) / np.sqrt(cin * 9),
        "b1": jax.random.normal(ks[1], (cout,), jnp.float32) * 0.1,
        "g1": 1.0 + 0.1 * jax.random.normal(ks[2], (cout,), jnp.float32),
        "be1": 0.1 * jax.random.normal(ks[3], (cout,), jnp.float32),
        "w2": jax.random.normal(ks[4], (3, 3, cout, cout), jnp.float32) / np.sqrt(cout * 9),
        "b2": jax.random.normal(ks[5], (cout,), jnp.float32) * 0.1,
        "g2": 1.0 + 0.1 * jax.random.normal(ks[6], (cout,), jnp.float32),
        "be2": 0.1 * jax.random.normal(ks[7], (cout,), jnp.float32),
    }
    if cin != cout:   # apply_mapping == True -> learned 1x1 residual conv
        p["wres"] = jax.random.normal(ks[8], (cin, cout), jnp.float32) / np.sqrt(cin)
        p["bres"] = jax.random.normal(ks[9], (cout,), jnp.float32) * 0.1
    return p


# ---------- pure numpy (float64) reference (keeps the conv biases) ----------
def _np_conv3x3(x, w, b):
    N, H, W, Ci = x.shape
    Co = w.shape[-1]
    xp = np.pad(x, ((0, 0), (1, 1), (1, 1), (0, 0)))
    out = np.zeros((N, H, W, Co), dtype=np.float64)
    for dh in range(3):
        for dw in range(3):
            out += xp[:, dh:dh + H, dw:dw + W, :] @ w[dh, dw]
    return out + b.reshape(1, 1, 1, Co)


def _np_bn_relu(x, g, be):
    mean = x.mean(axis=(0, 1, 2), keepdims=True)
    var = x.var(axis=(0, 1, 2), keepdims=True)  # biased, like PyTorch training BN
    y = (x - mean) / np.sqrt(var + BN_EPS) * g.reshape(1, 1, 1, -1) + be.reshape(1, 1, 1, -1)
    return np.maximum(y, 0.0)


def ref_base_block(x_nchw, layer_params):
    x = np.transpose(np.asarray(x_nchw, np.float64), (0, 2, 3, 1))
    for p in layer_params:
        pn = {k: np.asarray(v, np.float64) for k, v in p.items()}
        h = _np_conv3x3(x, pn["w1"], pn["b1"])
        h = _np_bn_relu(h, pn["g1"], pn["be1"])
        h2 = _np_conv3x3(h, pn["w2"], pn["b2"])
        if "wres" in pn:
            res = x @ pn["wres"] + pn["bres"].reshape(1, 1, 1, -1)
        else:
            res = x
        x = _np_bn_relu(h2 + res, pn["g2"], pn["be2"])
    return np.transpose(x, (0, 3, 1, 2))


if __name__ == "__main__":
    key = jax.random.PRNGKey(0)
    kx, kp0, kp1 = jax.random.split(key, 3)

    in_channels, out_channels, block_depth = 4, 8, 2
    N, H, W = 2, 16, 16
    x = jax.random.normal(kx, (N, in_channels, H, W), jnp.float32)  # NCHW (PyTorch)

    layer_params = [init_layer_params(kp0, in_channels, out_channels),
                    init_layer_params(kp1, out_channels, out_channels)]
    prepared = prepare_block_params(layer_params, N, H, W)

    fwd = jax.jit(lambda xx: pallas_base_block(xx, prepared))
    out = jax.block_until_ready(fwd(x))

    assert out.shape == (N, out_channels, H, W)
    ref = ref_base_block(np.asarray(x), layer_params)
    np.testing.assert_allclose(np.asarray(out), ref, atol=5e-2, rtol=5e-2)
    print("KERNEL_OK")
</pallas_src>

<mosaic_0001>
module attributes {stable_mosaic.version = 11 : i64} {
  func.func @_block_kernel(%arg0: memref<32x128xf32, #tpu.memory_space<vmem>>, %arg1: memref<3x128x128xbf16, #tpu.memory_space<vmem>>, %arg2: memref<3x128x128xbf16, #tpu.memory_space<vmem>>, %arg3: memref<128x128xbf16, #tpu.memory_space<vmem>>, %arg4: memref<128x128xf32, #tpu.memory_space<vmem>>, %arg5: memref<2x4x128xf32, #tpu.memory_space<vmem>>, %arg6: memref<1x2x3x128x128xbf16, #tpu.memory_space<any>>, %arg7: memref<32x128xf32, #tpu.memory_space<vmem>>, %arg8: memref<36x128xf32, #tpu.memory_space<vmem>>, %arg9: memref<36x128xf32, #tpu.memory_space<vmem>>, %arg10: memref<1x2x3x128x128xbf16, #tpu.memory_space<vmem>>, %arg11: memref<1x!tpu.dma_semaphore, #tpu.memory_space<semaphore_mem>>) attributes {dimension_semantics = [], scalar_prefetch = 0 : i64, scratch_operands = 4 : i64, tpu.core_type = #tpu.core_type<tc>} {
    %c0_i32 = arith.constant 0 : i32
    %c0_i32_0 = arith.constant 0 : i32
    %c0_i32_1 = arith.constant 0 : i32
    %c0_i32_2 = arith.constant 0 : i32
    %c0_i32_3 = arith.constant 0 : i32
    %c0_i32_4 = arith.constant 0 : i32
    %c0_i32_5 = arith.constant 0 : i32
    %0 = tpu.memref_slice %arg6[%c0_i32, %c0_i32_2, %c0_i32_3, %c0_i32_4, %c0_i32_5] : memref<1x2x3x128x128xbf16, #tpu.memory_space<any>> -> memref<1x2x3x128x128xbf16, #tpu.memory_space<any>>
    %1 = tpu.memref_squeeze %0 : memref<1x2x3x128x128xbf16, #tpu.memory_space<any>> -> memref<2x3x128x128xbf16, #tpu.memory_space<any>>
    %c0_i32_6 = arith.constant 0 : i32
    %c0_i32_7 = arith.constant 0 : i32
    %c0_i32_8 = arith.constant 0 : i32
    %c0_i32_9 = arith.constant 0 : i32
    %2 = tpu.memref_slice %arg10[%c0_i32_0, %c0_i32_6, %c0_i32_7, %c0_i32_8, %c0_i32_9] : memref<1x2x3x128x128xbf16, #tpu.memory_space<vmem>> -> memref<1x2x3x128x128xbf16, #tpu.memory_space<vmem>>
    %3 = tpu.memref_squeeze %2 : memref<1x2x3x128x128xbf16, #tpu.memory_space<vmem>> -> memref<2x3x128x128xbf16, #tpu.memory_space<vmem>>
    %4 = tpu.memref_slice %arg11[%c0_i32_1] : memref<1x!tpu.dma_semaphore, #tpu.memory_space<semaphore_mem>> -> memref<1x!tpu.dma_semaphore, #tpu.memory_space<semaphore_mem>>
    %5 = tpu.memref_squeeze %4 : memref<1x!tpu.dma_semaphore, #tpu.memory_space<semaphore_mem>> -> memref<!tpu.dma_semaphore, #tpu.memory_space<semaphore_mem>>
    tpu.enqueue_dma source(%1 : memref<2x3x128x128xbf16, #tpu.memory_space<any>>) target(%3 : memref<2x3x128x128xbf16, #tpu.memory_space<vmem>>) target_semaphore(%5 : memref<!tpu.dma_semaphore, #tpu.memory_space<semaphore_mem>>)
    %cst = arith.constant 0.000000e+00 : f32
    %6 = vector.broadcast %cst : f32 to vector<1x128xf32>
    %c0 = arith.constant 0 : index
    %c0_10 = arith.constant 0 : index
    %7 = vector.load %arg8[%c0, %c0_10] : memref<36x128xf32, #tpu.memory_space<vmem>>, vector<1x128xf32>
    tpu.vector_store %arg8[%c0, %c0_10], %6 {strides = array<i32>} : memref<36x128xf32, #tpu.memory_space<vmem>>, vector<1x128xf32>,
    %c17 = arith.constant 17 : index
    %c0_11 = arith.constant 0 : index
    %8 = vector.load %arg8[%c17, %c0_11] : memref<36x128xf32, #tpu.memory_space<vmem>>, vector<1x128xf32>
    tpu.vector_store %arg8[%c17, %c0_11], %6 {strides = array<i32>} : memref<36x128xf32, #tpu.memory_space<vmem>>, vector<1x128xf32>,
    %c0_12 = arith.constant 0 : index
    %c0_13 = arith.constant 0 : index
    %9 = vector.load %arg9[%c0_12, %c0_13] : memref<36x128xf32, #tpu.memory_space<vmem>>, vector<1x128xf32>
    tpu.vector_store %arg9[%c0_12, %c0_13], %6 {strides = array<i32>} : memref<36x128xf32, #tpu.memory_space<vmem>>, vector<1x128xf32>,
    %c17_14 = arith.constant 17 : index
    %c0_15 = arith.constant 0 : index
    %10 = vector.load %arg9[%c17_14, %c0_15] : memref<36x128xf32, #tpu.memory_space<vmem>>, vector<1x128xf32>
    tpu.vector_store %arg9[%c17_14, %c0_15], %6 {strides = array<i32>} : memref<36x128xf32, #tpu.memory_space<vmem>>, vector<1x128xf32>,
    %c18 = arith.constant 18 : index
    %c0_16 = arith.constant 0 : index
    %11 = vector.load %arg8[%c18, %c0_16] : memref<36x128xf32, #tpu.memory_space<vmem>>, vector<1x128xf32>
    tpu.vector_store %arg8[%c18, %c0_16], %6 {strides = array<i32>} : memref<36x128xf32, #tpu.memory_space<vmem>>, vector<1x128xf32>,
    %c35 = arith.constant 35 : index
    %c0_17 = arith.constant 0 : index
    %12 = vector.load %arg8[%c35, %c0_17] : memref<36x128xf32, #tpu.memory_space<vmem>>, vector<1x128xf32>
    tpu.vector_store %arg8[%c35, %c0_17], %6 {strides = array<i32>} : memref<36x128xf32, #tpu.memory_space<vmem>>, vector<1x128xf32>,
    %c18_18 = arith.constant 18 : index
    %c0_19 = arith.constant 0 : index
    %13 = vector.load %arg9[%c18_18, %c0_19] : memref<36x128xf32, #tpu.memory_space<vmem>>, vector<1x128xf32>
    tpu.vector_store %arg9[%c18_18, %c0_19], %6 {strides = array<i32>} : memref<36x128xf32, #tpu.memory_space<vmem>>, vector<1x128xf32>,
    %c35_20 = arith.constant 35 : index
    %c0_21 = arith.constant 0 : index
    %14 = vector.load %arg9[%c35_20, %c0_21] : memref<36x128xf32, #tpu.memory_space<vmem>>, vector<1x128xf32>
    tpu.vector_store %arg9[%c35_20, %c0_21], %6 {strides = array<i32>} : memref<36x128xf32, #tpu.memory_space<vmem>>, vector<1x128xf32>,
    %c0_22 = arith.constant 0 : index
    %c0_23 = arith.constant 0 : index
    %15 = vector.load %arg0[%c0_22, %c0_23] : memref<32x128xf32, #tpu.memory_space<vmem>>, vector<16x128xf32>
    %c1 = arith.constant 1 : index
    %c0_24 = arith.constant 0 : index
    %16 = vector.load %arg8[%c1, %c0_24] : memref<36x128xf32, #tpu.memory_space<vmem>>, vector<16x128xf32>
    tpu.vector_store %arg8[%c1, %c0_24], %15 {strides = array<i32>} : memref<36x128xf32, #tpu.memory_space<vmem>>, vector<16x128xf32>,
    %c16 = arith.constant 16 : index
    %c0_25 = arith.constant 0 : index
    %17 = vector.load %arg0[%c16, %c0_25] : memref<32x128xf32, #tpu.memory_space<vmem>>, vector<16x128xf32>
    %c19 = arith.constant 19 : index
    %c0_26 = arith.constant 0 : index
    %18 = vector.load %arg8[%c19, %c0_26] : memref<36x128xf32, #tpu.memory_space<vmem>>, vector<16x128xf32>
    tpu.vector_store %arg8[%c19, %c0_26], %17 {strides = array<i32>} : memref<36x128xf32, #tpu.memory_space<vmem>>, vector<16x128xf32>,
    %c0_27 = arith.constant 0 : index
    %c0_28 = arith.constant 0 : index
    %19 = vector.load %arg4[%c0_27, %c0_28] : memref<128x128xf32, #tpu.memory_space<vmem>>, vector<128x128xf32>
    %c0_29 = arith.constant 0 : index
    %c0_30 = arith.constant 0 : index
    %c0_31 = arith.constant 0 : index
    %20 = vector.load %arg5[%c0_29, %c0_30, %c0_31] : memref<2x4x128xf32, #tpu.memory_space<vmem>>, vector<1x4x128xf32>
    %21 = vector.shape_cast %20 : vector<1x4x128xf32> to vector<4x128xf32>
    %22 = vector.extract_strided_slice %21 {offsets = [0, 0], sizes = [1, 128], strides = [1, 1]} : vector<4x128xf32> to vector<1x128xf32>
    %23 = vector.extract_strided_slice %21 {offsets = [1, 0], sizes = [1, 128], strides = [1, 1]} : vector<4x128xf32> to vector<1x128xf32>
    %24 = vector.extract_strided_slice %21 {offsets = [2, 0], sizes = [1, 128], strides = [1, 1]} : vector<4x128xf32> to vector<1x128xf32>
    %25 = vector.extract_strided_slice %21 {offsets = [3, 0], sizes = [1, 128], strides = [1, 1]} : vector<4x128xf32> to vector<1x128xf32>
    %c0_32 = arith.constant 0 : index
    %c0_33 = arith.constant 0 : index
    %c0_34 = arith.constant 0 : index
    %26 = vector.load %arg1[%c0_32, %c0_33, %c0_34] : memref<3x128x128xbf16, #tpu.memory_space<vmem>>, vector<1x128x128xbf16>
    %27 = vector.shape_cast %26 : vector<1x128x128xbf16> to vector<128x128xbf16>
    %28 = arith.extf %27 : vector<128x128xbf16> to vector<128x128xf32>
    %c0_35 = arith.constant 0 : index
    %c0_36 = arith.constant 0 : index
    %29 = vector.load %arg8[%c0_35, %c0_36] : memref<36x128xf32, #tpu.memory_space<vmem>>, vector<16x128xf32>
    %cst_37 = arith.constant dense<0.000000e+00> : vector<16x128xf32>
    %30 = tpu.matmul %29, %28, %cst_37 {dimension_numbers = #tpu.dot_dimension_numbers<[1], [0], [0], [1], [0, 0, 1, 1], [], []>} : vector<16x128xf32>, vector<128x128xf32>, vector<16x128xf32> -> vector<16x128xf32>
    %c18_38 = arith.constant 18 : index
    %c0_39 = arith.constant 0 : index
    %31 = vector.load %arg8[%c18_38, %c0_39] : memref<36x128xf32, #tpu.memory_space<vmem>>, vector<16x128xf32>
    %cst_40 = arith.constant dense<0.000000e+00> : vector<16x128xf32>
    %32 = tpu.matmul %31, %28, %cst_40 {dimension_numbers = #tpu.dot_dimension_numbers<[1], [0], [0], [1], [0, 0, 1, 1], [], []>} : vector<16x128xf32>, vector<128x128xf32>, vector<16x128xf32> -> vector<16x128xf32>
    %c1_41 = arith.constant 1 : index
    %c0_42 = arith.constant 0 : index
    %c0_43 = arith.constant 0 : index
    %33 = vector.load %arg1[%c1_41, %c0_42, %c0_43] : memref<3x128x128xbf16, #tpu.memory_space<vmem>>, vector<1x128x128xbf16>
    %34 = vector.shape_cast %33 : vector<1x128x128xbf16> to vector<128x128xbf16>
    %35 = arith.extf %34 : vector<128x128xbf16> to vector<128x128xf32>
    %c1_44 = arith.constant 1 : index
    %c0_45 = arith.constant 0 : index
    %36 = vector.load %arg8[%c1_44, %c0_45] : memref<36x128xf32, #tpu.memory_space<vmem>>, vector<16x128xf32>
    %cst_46 = arith.constant dense<0.000000e+00> : vector<16x128xf32>
    %37 = tpu.matmul %36, %35, %cst_46 {dimension_numbers = #tpu.dot_dimension_numbers<[1], [0], [0], [1], [0, 0, 1, 1], [], []>} : vector<16x128xf32>, vector<128x128xf32>, vector<16x128xf32> -> vector<16x128xf32>
    %38 = arith.addf %30, %37 : vector<16x128xf32>
    %c19_47 = arith.constant 19 : index
    %c0_48 = arith.constant 0 : index
    %39 = vector.load %arg8[%c19_47, %c0_48] : memref<36x128xf32, #tpu.memory_space<vmem>>, vector<16x128xf32>
    %cst_49 = arith.constant dense<0.000000e+00> : vector<16x128xf32>
    %40 = tpu.matmul %39, %35, %cst_49 {dimension_numbers = #tpu.dot_dimension_numbers<[1], [0], [0], [1], [0, 0, 1, 1], [], []>} : vector<16x128xf32>, vector<128x128xf32>, vector<16x128xf32> -> vector<16x128xf32>
    %41 = arith.addf %32, %40 : vector<16x128xf32>
    %c2 = arith.constant 2 : index
    %c0_50 = arith.constant 0 : index
    %c0_51 = arith.constant 0 : index
    %42 = vector.load %arg1[%c2, %c0_50, %c0_51] : memref<3x128x128xbf16, #tpu.memory_space<vmem>>, vector<1x128x128xbf16>
    %43 = vector.shape_cast %42 : vector<1x128x128xbf16> to vector<128x128xbf16>
    %44 = arith.extf %43 : vector<128x128xbf16> to vector<128x128xf32>
    %c2_52 = arith.constant 2 : index
    %c0_53 = arith.constant 0 : index
    %45 = vector.load %arg8[%c2_52, %c0_53] : memref<36x128xf32, #tpu.memory_space<vmem>>, vector<16x128xf32>
    %cst_54 = arith.constant dense<0.000000e+00> : vector<16x128xf32>
    %46 = tpu.matmul %45, %44, %cst_54 {dimension_numbers = #tpu.dot_dimension_numbers<[1], [0], [0], [1], [0, 0, 1, 1], [], []>} : vector<16x128xf32>, vector<128x128xf32>, vector<16x128xf32> -> vector<16x128xf32>
    %47 = arith.addf %38, %46 : vector<16x128xf32>
    %c20 = arith.constant 20 : index
    %c0_55 = arith.constant 0 : index
    %48 = vector.load %arg8[%c20, %c0_55] : memref<36x128xf32, #tpu.memory_space<vmem>>, vector<16x128xf32>
    %cst_56 = arith.constant dense<0.000000e+00> : vector<16x128xf32>
    %49 = tpu.matmul %48, %44, %cst_56 {dimension_numbers = #tpu.dot_dimension_numbers<[1], [0], [0], [1], [0, 0, 1, 1], [], []>} : vector<16x128xf32>, vector<128x128xf32>, vector<16x128xf32> -> vector<16x128xf32>
    %50 = arith.addf %41, %49 : vector<16x128xf32>
    %cst_57 = arith.constant dense<0.000000e+00> : vector<128xf32>
    %51 = vector.multi_reduction <add>, %47, %cst_57 [0] : vector<16x128xf32> to vector<128xf32>
    %52 = vector.shape_cast %51 : vector<128xf32> to vector<1x128xf32>
    %53 = arith.mulf %47, %47 : vector<16x128xf32>
    %cst_58 = arith.constant dense<0.000000e+00> : vector<128xf32>
    %54 = vector.multi_reduction <add>, %53, %cst_58 [0] : vector<16x128xf32> to vector<128xf32>
    %55 = vector.shape_cast %54 : vector<128xf32> to vector<1x128xf32>
    %cst_59 = arith.constant dense<0.000000e+00> : vector<128xf32>
    %56 = vector.multi_reduction <add>, %50, %cst_59 [0] : vector<16x128xf32> to vector<128xf32>
    %57 = vector.shape_cast %56 : vector<128xf32> to vector<1x128xf32>
    %58 = arith.addf %52, %57 : vector<1x128xf32>
    %59 = arith.mulf %50, %50 : vector<16x128xf32>
    %cst_60 = arith.constant dense<0.000000e+00> : vector<128xf32>
    %60 = vector.multi_reduction <add>, %59, %cst_60 [0] : vector<16x128xf32> to vector<128xf32>
    %61 = vector.shape_cast %60 : vector<128xf32> to vector<1x128xf32>
    %62 = arith.addf %55, %61 : vector<1x128xf32>
    %cst_61 = arith.constant dense<0.000000e+00> : vector<1x128xf32>
    %63 = tpu.matmul %58, %19, %cst_61 {dimension_numbers = #tpu.dot_dimension_numbers<[1], [0], [0], [1], [0, 0, 1, 1], [], []>} : vector<1x128xf32>, vector<128x128xf32>, vector<1x128xf32> -> vector<1x128xf32>
    %cst_62 = arith.constant dense<0.000000e+00> : vector<1x128xf32>
    %64 = tpu.matmul %62, %19, %cst_62 {dimension_numbers = #tpu.dot_dimension_numbers<[1], [0], [0], [1], [0, 0, 1, 1], [], []>} : vector<1x128xf32>, vector<128x128xf32>, vector<1x128xf32> -> vector<1x128xf32>
    %65 = arith.mulf %63, %63 : vector<1x128xf32>
    %66 = arith.subf %64, %65 : vector<1x128xf32>
    %cst_63 = arith.constant 0.000000e+00 : f32
    %67 = vector.broadcast %cst_63 : f32 to vector<1x128xf32>
    %68 = arith.maximumf %66, %67 : vector<1x128xf32>
    %cst_64 = arith.constant 9.99999974E-6 : f32
    %69 = vector.broadcast %cst_64 : f32 to vector<1x128xf32>
    %70 = arith.addf %68, %69 : vector<1x128xf32>
    %71 = math.rsqrt %70 : vector<1x128xf32>
    %72 = arith.mulf %22, %71 : vector<1x128xf32>
    %73 = arith.mulf %63, %72 : vector<1x128xf32>
    %74 = arith.subf %23, %73 : vector<1x128xf32>
    %75 = vector.broadcast %72 : vector<1x128xf32> to vector<16x128xf32>
    %76 = arith.mulf %47, %75 : vector<16x128xf32>
    %77 = vector.broadcast %74 : vector<1x128xf32> to vector<16x128xf32>
    %78 = arith.addf %76, %77 : vector<16x128xf32>
    %cst_65 = arith.constant 0.000000e+00 : f32
    %79 = vector.broadcast %cst_65 : f32 to vector<16x128xf32>
    %80 = arith.maximumf %78, %79 : vector<16x128xf32>
    %c1_66 = arith.constant 1 : index
    %c0_67 = arith.constant 0 : index
    %81 = vector.load %arg9[%c1_66, %c0_67] : memref<36x128xf32, #tpu.memory_space<vmem>>, vector<16x128xf32>
    tpu.vector_store %arg9[%c1_66, %c0_67], %80 {strides = array<i32>} : memref<36x128xf32, #tpu.memory_space<vmem>>, vector<16x128xf32>,
    %82 = vector.broadcast %72 : vector<1x128xf32> to vector<16x128xf32>
    %83 = arith.mulf %50, %82 : vector<16x128xf32>
    %84 = vector.broadcast %74 : vector<1x128xf32> to vector<16x128xf32>
    %85 = arith.addf %83, %84 : vector<16x128xf32>
    %cst_68 = arith.constant 0.000000e+00 : f32
    %86 = vector.broadcast %cst_68 : f32 to vector<16x128xf32>
    %87 = arith.maximumf %85, %86 : vector<16x128xf32>
    %c19_69 = arith.constant 19 : index
    %c0_70 = arith.constant 0 : index
    %88 = vector.load %arg9[%c19_69, %c0_70] : memref<36x128xf32, #tpu.memory_space<vmem>>, vector<16x128xf32>
    tpu.vector_store %arg9[%c19_69, %c0_70], %87 {strides = array<i32>} : memref<36x128xf32, #tpu.memory_space<vmem>>, vector<16x128xf32>,
    %c0_71 = arith.constant 0 : index
    %c0_72 = arith.constant 0 : index
    %c0_73 = arith.constant 0 : index
    %89 = vector.load %arg2[%c0_71, %c0_72, %c0_73] : memref<3x128x128xbf16, #tpu.memory_space<vmem>>, vector<1x128x128xbf16>
    %90 = vector.shape_cast %89 : vector<1x128x128xbf16> to vector<128x128xbf16>
    %91 = arith.extf %90 : vector<128x128xbf16> to vector<128x128xf32>
    %c0_74 = arith.constant 0 : index
    %c0_75 = arith.constant 0 : index
    %92 = vector.load %arg9[%c0_74, %c0_75] : memref<36x128xf32, #tpu.memory_space<vmem>>, vector<16x128xf32>
    %cst_76 = arith.constant dense<0.000000e+00> : vector<16x128xf32>
    %93 = tpu.matmul %92, %91, %cst_76 {dimension_numbers = #tpu.dot_dimension_numbers<[1], [0], [0], [1], [0, 0, 1, 1], [], []>} : vector<16x128xf32>, vector<128x128xf32>, vector<16x128xf32> -> vector<16x128xf32>
    %c18_77 = arith.constant 18 : index
    %c0_78 = arith.constant 0 : index
    %94 = vector.load %arg9[%c18_77, %c0_78] : memref<36x128xf32, #tpu.memory_space<vmem>>, vector<16x128xf32>
    %cst_79 = arith.constant dense<0.000000e+00> : vector<16x128xf32>
    %95 = tpu.matmul %94, %91, %cst_79 {dimension_numbers = #tpu.dot_dimension_numbers<[1], [0], [0], [1], [0, 0, 1, 1], [], []>} : vector<16x128xf32>, vector<128x128xf32>, vector<16x128xf32> -> vector<16x128xf32>
    %c1_80 = arith.constant 1 : index
    %c0_81 = arith.constant 0 : index
    %c0_82 = arith.constant 0 : index
    %96 = vector.load %arg2[%c1_80, %c0_81, %c0_82] : memref<3x128x128xbf16, #tpu.memory_space<vmem>>, vector<1x128x128xbf16>
    %97 = vector.shape_cast %96 : vector<1x128x128xbf16> to vector<128x128xbf16>
    %98 = arith.extf %97 : vector<128x128xbf16> to vector<128x128xf32>
    %c1_83 = arith.constant 1 : index
    %c0_84 = arith.constant 0 : index
    %99 = vector.load %arg9[%c1_83, %c0_84] : memref<36x128xf32, #tpu.memory_space<vmem>>, vector<16x128xf32>
    %cst_85 = arith.constant dense<0.000000e+00> : vector<16x128xf32>
    %100 = tpu.matmul %99, %98, %cst_85 {dimension_numbers = #tpu.dot_dimension_numbers<[1], [0], [0], [1], [0, 0, 1, 1], [], []>} : vector<16x128xf32>, vector<128x128xf32>, vector<16x128xf32> -> vector<16x128xf32>
    %101 = arith.addf %93, %100 : vector<16x128xf32>
    %c19_86 = arith.constant 19 : index
    %c0_87 = arith.constant 0 : index
    %102 = vector.load %arg9[%c19_86, %c0_87] : memref<36x128xf32, #tpu.memory_space<vmem>>, vector<16x128xf32>
    %cst_88 = arith.constant dense<0.000000e+00> : vector<16x128xf32>
    %103 = tpu.matmul %102, %98, %cst_88 {dimension_numbers = #tpu.dot_dimension_numbers<[1], [0], [0], [1], [0, 0, 1, 1], [], []>} : vector<16x128xf32>, vector<128x128xf32>, vector<16x128xf32> -> vector<16x128xf32>
    %104 = arith.addf %95, %103 : vector<16x128xf32>
    %c2_89 = arith.constant 2 : index
    %c0_90 = arith.constant 0 : index
    %c0_91 = arith.constant 0 : index
    %105 = vector.load %arg2[%c2_89, %c0_90, %c0_91] : memref<3x128x128xbf16, #tpu.memory_space<vmem>>, vector<1x128x128xbf16>
    %106 = vector.shape_cast %105 : vector<1x128x128xbf16> to vector<128x128xbf16>
    %107 = arith.extf %106 : vector<128x128xbf16> to vector<128x128xf32>
    %c2_92 = arith.constant 2 : index
    %c0_93 = arith.constant 0 : index
    %108 = vector.load %arg9[%c2_92, %c0_93] : memref<36x128xf32, #tpu.memory_space<vmem>>, vector<16x128xf32>
    %cst_94 = arith.constant dense<0.000000e+00> : vector<16x128xf32>
    %109 = tpu.matmul %108, %107, %cst_94 {dimension_numbers = #tpu.dot_dimension_numbers<[1], [0], [0], [1], [0, 0, 1, 1], [], []>} : vector<16x128xf32>, vector<128x128xf32>, vector<16x128xf32> -> vector<16x128xf32>
    %110 = arith.addf %101, %109 : vector<16x128xf32>
    %c20_95 = arith.constant 20 : index
    %c0_96 = arith.constant 0 : index
    %111 = vector.load %arg9[%c20_95, %c0_96] : memref<36x128xf32, #tpu.memory_space<vmem>>, vector<16x128xf32>
    %cst_97 = arith.constant dense<0.000000e+00> : vector<16x128xf32>
    %112 = tpu.matmul %111, %107, %cst_97 {dimension_numbers = #tpu.dot_dimension_numbers<[1], [0], [0], [1], [0, 0, 1, 1], [], []>} : vector<16x128xf32>, vector<128x128xf32>, vector<16x128xf32> -> vector<16x128xf32>
    %113 = arith.addf %104, %112 : vector<16x128xf32>
    %c0_98 = arith.constant 0 : index
    %c0_99 = arith.constant 0 : index
    %114 = vector.load %arg3[%c0_98, %c0_99] : memref<128x128xbf16, #tpu.memory_space<vmem>>, vector<128x128xbf16>
    %115 = arith.extf %114 : vector<128x128xbf16> to vector<128x128xf32>
    %c1_100 = arith.constant 1 : index
    %c0_101 = arith.constant 0 : index
    %116 = vector.load %arg8[%c1_100, %c0_101] : memref<36x128xf32, #tpu.memory_space<vmem>>, vector<16x128xf32>
    %cst_102 = arith.constant dense<0.000000e+00> : vector<16x128xf32>
    %117 = tpu.matmul %116, %115, %cst_102 {dimension_numbers = #tpu.dot_dimension_numbers<[1], [0], [0], [1], [0, 0, 1, 1], [], []>} : vector<16x128xf32>, vector<128x128xf32>, vector<16x128xf32> -> vector<16x128xf32>
    %118 = arith.addf %110, %117 : vector<16x128xf32>
    %c19_103 = arith.constant 19 : index
    %c0_104 = arith.constant 0 : index
    %119 = vector.load %arg8[%c19_103, %c0_104] : memref<36x128xf32, #tpu.memory_space<vmem>>, vector<16x128xf32>
    %cst_105 = arith.constant dense<0.000000e+00> : vector<16x128xf32>
    %120 = tpu.matmul %119, %115, %cst_105 {dimension_numbers = #tpu.dot_dimension_numbers<[1], [0], [0], [1], [0, 0, 1, 1], [], []>} : vector<16x128xf32>, vector<128x128xf32>, vector<16x128xf32> -> vector<16x128xf32>
    %121 = arith.addf %113, %120 : vector<16x128xf32>
    %cst_106 = arith.constant dense<0.000000e+00> : vector<128xf32>
    %122 = vector.multi_reduction <add>, %118, %cst_106 [0] : vector<16x128xf32> to vector<128xf32>
    %123 = vector.shape_cast %122 : vector<128xf32> to vector<1x128xf32>
    %124 = arith.mulf %118, %118 : vector<16x128xf32>
    %cst_107 = arith.constant dense<0.000000e+00> : vector<128xf32>
    %125 = vector.multi_reduction <add>, %124, %cst_107 [0] : vector<16x128xf32> to vector<128xf32>
    %126 = vector.shape_cast %125 : vector<128xf32> to vector<1x128xf32>
    %cst_108 = arith.constant dense<0.000000e+00> : vector<128xf32>
    %127 = vector.multi_reduction <add>, %121, %cst_108 [0] : vector<16x128xf32> to vector<128xf32>
    %128 = vector.shape_cast %127 : vector<128xf32> to vector<1x128xf32>
    %129 = arith.addf %123, %128 : vector<1x128xf32>
    %130 = arith.mulf %121, %121 : vector<16x128xf32>
    %cst_109 = arith.constant dense<0.000000e+00> : vector<128xf32>
    %131 = vector.multi_reduction <add>, %130, %cst_109 [0] : vector<16x128xf32> to vector<128xf32>
    %132 = vector.shape_cast %131 : vector<128xf32> to vector<1x128xf32>
    %133 = arith.addf %126, %132 : vector<1x128xf32>
    %cst_110 = arith.constant dense<0.000000e+00> : vector<1x128xf32>
    %134 = tpu.matmul %129, %19, %cst_110 {dimension_numbers = #tpu.dot_dimension_numbers<[1], [0], [0], [1], [0, 0, 1, 1], [], []>} : vector<1x128xf32>, vector<128x128xf32>, vector<1x128xf32> -> vector<1x128xf32>
    %cst_111 = arith.constant dense<0.000000e+00> : vector<1x128xf32>
    %135 = tpu.matmul %133, %19, %cst_111 {dimension_numbers = #tpu.dot_dimension_numbers<[1], [0], [0], [1], [0, 0, 1, 1], [], []>} : vector<1x128xf32>, vector<128x128xf32>, vector<1x128xf32> -> vector<1x128xf32>
    %136 = arith.mulf %134, %134 : vector<1x128xf32>
    %137 = arith.subf %135, %136 : vector<1x128xf32>
    %cst_112 = arith.constant 0.000000e+00 : f32
    %138 = vector.broadcast %cst_112 : f32 to vector<1x128xf32>
    %139 = arith.maximumf %137, %138 : vector<1x128xf32>
    %cst_113 = arith.constant 9.99999974E-6 : f32
    %140 = vector.broadcast %cst_113 : f32 to vector<1x128xf32>
    %141 = arith.addf %139, %140 : vector<1x128xf32>
    %142 = math.rsqrt %141 : vector<1x128xf32>
    %143 = arith.mulf %24, %142 : vector<1x128xf32>
    %144 = arith.mulf %134, %143 : vector<1x128xf32>
    %145 = arith.subf %25, %144 : vector<1x128xf32>
    %146 = vector.broadcast %143 : vector<1x128xf32> to vector<16x128xf32>
    %147 = arith.mulf %118, %146 : vector<16x128xf32>
    %148 = vector.broadcast %145 : vector<1x128xf32> to vector<16x128xf32>
    %149 = arith.addf %147, %148 : vector<16x128xf32>
    %cst_114 = arith.constant 0.000000e+00 : f32
    %150 = vector.broadcast %cst_114 : f32 to vector<16x128xf32>
    %151 = arith.maximumf %149, %150 : vector<16x128xf32>
    %c1_115 = arith.constant 1 : index
    %c0_116 = arith.constant 0 : index
    %152 = vector.load %arg8[%c1_115, %c0_116] : memref<36x128xf32, #tpu.memory_space<vmem>>, vector<16x128xf32>
    tpu.vector_store %arg8[%c1_115, %c0_116], %151 {strides = array<i32>} : memref<36x128xf32, #tpu.memory_space<vmem>>, vector<16x128xf32>,
    %153 = vector.broadcast %143 : vector<1x128xf32> to vector<16x128xf32>
    %154 = arith.mulf %121, %153 : vector<16x128xf32>
    %155 = vector.broadcast %145 : vector<1x128xf32> to vector<16x128xf32>
    %156 = arith.addf %154, %155 : vector<16x128xf32>
    %cst_117 = arith.constant 0.000000e+00 : f32
    %157 = vector.broadcast %cst_117 : f32 to vector<16x128xf32>
    %158 = arith.maximumf %156, %157 : vector<16x128xf32>
    %c19_118 = arith.constant 19 : index
    %c0_119 = arith.constant 0 : index
    %159 = vector.load %arg8[%c19_118, %c0_119] : memref<36x128xf32, #tpu.memory_space<vmem>>, vector<16x128xf32>
    tpu.vector_store %arg8[%c19_118, %c0_119], %158 {strides = array<i32>} : memref<36x128xf32, #tpu.memory_space<vmem>>, vector<16x128xf32>,
    %c0_i32_120 = arith.constant 0 : i32
    %c0_i32_121 = arith.constant 0 : i32
    %c0_i32_122 = arith.constant 0 : i32
    %c0_i32_123 = arith.constant 0 : i32
    %c0_i32_124 = arith.constant 0 : i32
    %c0_i32_125 = arith.constant 0 : i32
    %c0_i32_126 = arith.constant 0 : i32
    %160 = tpu.memref_slice %arg6[%c0_i32_120, %c0_i32_123, %c0_i32_124, %c0_i32_125, %c0_i32_126] : memref<1x2x3x128x128xbf16, #tpu.memory_space<any>> -> memref<1x2x3x128x128xbf16, #tpu.memory_space<any>>
    %161 = tpu.memref_squeeze %160 : memref<1x2x3x128x128xbf16, #tpu.memory_space<any>> -> memref<2x3x128x128xbf16, #tpu.memory_space<any>>
    %c0_i32_127 = arith.constant 0 : i32
    %c0_i32_128 = arith.constant 0 : i32
    %c0_i32_129 = arith.constant 0 : i32
    %c0_i32_130 = arith.constant 0 : i32
    %162 = tpu.memref_slice %arg10[%c0_i32_121, %c0_i32_127, %c0_i32_128, %c0_i32_129, %c0_i32_130] : memref<1x2x3x128x128xbf16, #tpu.memory_space<vmem>> -> memref<1x2x3x128x128xbf16, #tpu.memory_space<vmem>>
    %163 = tpu.memref_squeeze %162 : memref<1x2x3x128x128xbf16, #tpu.memory_space<vmem>> -> memref<2x3x128x128xbf16, #tpu.memory_space<vmem>>
    %164 = tpu.memref_slice %arg11[%c0_i32_122] : memref<1x!tpu.dma_semaphore, #tpu.memory_space<semaphore_mem>> -> memref<1x!tpu.dma_semaphore, #tpu.memory_space<semaphore_mem>>
    %165 = tpu.memref_squeeze %164 : memref<1x!tpu.dma_semaphore, #tpu.memory_space<semaphore_mem>> -> memref<!tpu.dma_semaphore, #tpu.memory_space<semaphore_mem>>
    tpu.wait_dma2 semaphore(%165 : memref<!tpu.dma_semaphore, #tpu.memory_space<semaphore_mem>>) src(%161 : memref<2x3x128x128xbf16, #tpu.memory_space<any>>) dst(%163 : memref<2x3x128x128xbf16, #tpu.memory_space<vmem>>)
    %c1_131 = arith.constant 1 : index
    %c0_132 = arith.constant 0 : index
    %c0_133 = arith.constant 0 : index
    %166 = vector.load %arg5[%c1_131, %c0_132, %c0_133] : memref<2x4x128xf32, #tpu.memory_space<vmem>>, vector<1x4x128xf32>
    %167 = vector.shape_cast %166 : vector<1x4x128xf32> to vector<4x128xf32>
    %168 = vector.extract_strided_slice %167 {offsets = [0, 0], sizes = [1, 128], strides = [1, 1]} : vector<4x128xf32> to vector<1x128xf32>
    %169 = vector.extract_strided_slice %167 {offsets = [1, 0], sizes = [1, 128], strides = [1, 1]} : vector<4x128xf32> to vector<1x128xf32>
    %170 = vector.extract_strided_slice %167 {offsets = [2, 0], sizes = [1, 128], strides = [1, 1]} : vector<4x128xf32> to vector<1x128xf32>
    %171 = vector.extract_strided_slice %167 {offsets = [3, 0], sizes = [1, 128], strides = [1, 1]} : vector<4x128xf32> to vector<1x128xf32>
    %c0_134 = arith.constant 0 : index
    %c0_135 = arith.constant 0 : index
    %c0_136 = arith.constant 0 : index
    %c0_137 = arith.constant 0 : index
    %c0_138 = arith.constant 0 : index
    %172 = vector.load %arg10[%c0_134, %c0_135, %c0_136, %c0_137, %c0_138] : memref<1x2x3x128x128xbf16, #tpu.memory_space<vmem>>, vector<1x1x1x128x128xbf16>
    %173 = vector.shape_cast %172 : vector<1x1x1x128x128xbf16> to vector<128x128xbf16>
    %174 = arith.extf %173 : vector<128x128xbf16> to vector<128x128xf32>
    %c0_139 = arith.constant 0 : index
    %c0_140 = arith.constant 0 : index
    %175 = vector.load %arg8[%c0_139, %c0_140] : memref<36x128xf32, #tpu.memory_space<vmem>>, vector<16x128xf32>
    %cst_141 = arith.constant dense<0.000000e+00> : vector<16x128xf32>
    %176 = tpu.matmul %175, %174, %cst_141 {dimension_numbers = #tpu.dot_dimension_numbers<[1], [0], [0], [1], [0, 0, 1, 1], [], []>} : vector<16x128xf32>, vector<128x128xf32>, vector<16x128xf32> -> vector<16x128xf32>
    %c18_142 = arith.constant 18 : index
    %c0_143 = arith.constant 0 : index
    %177 = vector.load %arg8[%c18_142, %c0_143] : memref<36x128xf32, #tpu.memory_space<vmem>>, vector<16x128xf32>
    %cst_144 = arith.constant dense<0.000000e+00> : vector<16x128xf32>
    %178 = tpu.matmul %177, %174, %cst_144 {dimension_numbers = #tpu.dot_dimension_numbers<[1], [0], [0], [1], [0, 0, 1, 1], [], []>} : vector<16x128xf32>, vector<128x128xf32>, vector<16x128xf32> -> vector<16x128xf32>
    %c0_145 = arith.constant 0 : index
    %c0_146 = arith.constant 0 : index
    %c1_147 = arith.constant 1 : index
    %c0_148 = arith.constant 0 : index
    %c0_149 = arith.constant 0 : index
    %179 = vector.load %arg10[%c0_145, %c0_146, %c1_147, %c0_148, %c0_149] : memref<1x2x3x128x128xbf16, #tpu.memory_space<vmem>>, vector<1x1x1x128x128xbf16>
    %180 = vector.shape_cast %179 : vector<1x1x1x128x128xbf16> to vector<128x128xbf16>
    %181 = arith.extf %180 : vector<128x128xbf16> to vector<128x128xf32>
    %c1_150 = arith.constant 1 : index
    %c0_151 = arith.constant 0 : index
    %182 = vector.load %arg8[%c1_150, %c0_151] : memref<36x128xf32, #tpu.memory_space<vmem>>, vector<16x128xf32>
    %cst_152 = arith.constant dense<0.000000e+00> : vector<16x128xf32>
    %183 = tpu.matmul %182, %181, %cst_152 {dimension_numbers = #tpu.dot_dimension_numbers<[1], [0], [0], [1], [0, 0, 1, 1], [], []>} : vector<16x128xf32>, vector<128x128xf32>, vector<16x128xf32> -> vector<16x128xf32>
    %184 = arith.addf %176, %183 : vector<16x128xf32>
    %c19_153 = arith.constant 19 : index
    %c0_154 = arith.constant 0 : index
    %185 = vector.load %arg8[%c19_153, %c0_154] : memref<36x128xf32, #tpu.memory_space<vmem>>, vector<16x128xf32>
    %cst_155 = arith.constant dense<0.000000e+00> : vector<16x128xf32>
    %186 = tpu.matmul %185, %181, %cst_155 {dimension_numbers = #tpu.dot_dimension_numbers<[1], [0], [0], [1], [0, 0, 1, 1], [], []>} : vector<16x128xf32>, vector<128x128xf32>, vector<16x128xf32> -> vector<16x128xf32>
    %187 = arith.addf %178, %186 : vector<16x128xf32>
    %c0_156 = arith.constant 0 : index
    %c0_157 = arith.constant 0 : index
    %c2_158 = arith.constant 2 : index
    %c0_159 = arith.constant 0 : index
    %c0_160 = arith.constant 0 : index
    %188 = vector.load %arg10[%c0_156, %c0_157, %c2_158, %c0_159, %c0_160] : memref<1x2x3x128x128xbf16, #tpu.memory_space<vmem>>, vector<1x1x1x128x128xbf16>
    %189 = vector.shape_cast %188 : vector<1x1x1x128x128xbf16> to vector<128x128xbf16>
    %190 = arith.extf %189 : vector<128x128xbf16> to vector<128x128xf32>
    %c2_161 = arith.constant 2 : index
    %c0_162 = arith.constant 0 : index
    %191 = vector.load %arg8[%c2_161, %c0_162] : memref<36x128xf32, #tpu.memory_space<vmem>>, vector<16x128xf32>
    %cst_163 = arith.constant dense<0.000000e+00> : vector<16x128xf32>
    %192 = tpu.matmul %191, %190, %cst_163 {dimension_numbers = #tpu.dot_dimension_numbers<[1], [0], [0], [1], [0, 0, 1, 1], [], []>} : vector<16x128xf32>, vector<128x128xf32>, vector<16x128xf32> -> vector<16x128xf32>
    %193 = arith.addf %184, %192 : vector<16x128xf32>
    %c20_164 = arith.constant 20 : index
    %c0_165 = arith.constant 0 : index
    %194 = vector.load %arg8[%c20_164, %c0_165] : memref<36x128xf32, #tpu.memory_space<vmem>>, vector<16x128xf32>
    %cst_166 = arith.constant dense<0.000000e+00> : vector<16x128xf32>
    %195 = tpu.matmul %194, %190, %cst_166 {dimension_numbers = #tpu.dot_dimension_numbers<[1], [0], [0], [1], [0, 0, 1, 1], [], []>} : vector<16x128xf32>, vector<128x128xf32>, vector<16x128xf32> -> vector<16x128xf32>
    %196 = arith.addf %187, %195 : vector<16x128xf32>
    %cst_167 = arith.constant dense<0.000000e+00> : vector<128xf32>
    %197 = vector.multi_reduction <add>, %193, %cst_167 [0] : vector<16x128xf32> to vector<128xf32>
    %198 = vector.shape_cast %197 : vector<128xf32> to vector<1x128xf32>
    %199 = arith.mulf %193, %193 : vector<16x128xf32>
    %cst_168 = arith.constant dense<0.000000e+00> : vector<128xf32>
    %200 = vector.multi_reduction <add>, %199, %cst_168 [0] : vector<16x128xf32> to vector<128xf32>
    %201 = vector.shape_cast %200 : vector<128xf32> to vector<1x128xf32>
    %cst_169 = arith.constant dense<0.000000e+00> : vector<128xf32>
    %202 = vector.multi_reduction <add>, %196, %cst_169 [0] : vector<16x128xf32> to vector<128xf32>
    %203 = vector.shape_cast %202 : vector<128xf32> to vector<1x128xf32>
    %204 = arith.addf %198, %203 : vector<1x128xf32>
    %205 = arith.mulf %196, %196 : vector<16x128xf32>
    %cst_170 = arith.constant dense<0.000000e+00> : vector<128xf32>
    %206 = vector.multi_reduction <add>, %205, %cst_170 [0] : vector<16x128xf32> to vector<128xf32>
    %207 = vector.shape_cast %206 : vector<128xf32> to vector<1x128xf32>
    %208 = arith.addf %201, %207 : vector<1x128xf32>
    %cst_171 = arith.constant dense<0.000000e+00> : vector<1x128xf32>
    %209 = tpu.matmul %204, %19, %cst_171 {dimension_numbers = #tpu.dot_dimension_numbers<[1], [0], [0], [1], [0, 0, 1, 1], [], []>} : vector<1x128xf32>, vector<128x128xf32>, vector<1x128xf32> -> vector<1x128xf32>
    %cst_172 = arith.constant dense<0.000000e+00> : vector<1x128xf32>
    %210 = tpu.matmul %208, %19, %cst_172 {dimension_numbers = #tpu.dot_dimension_numbers<[1], [0], [0], [1], [0, 0, 1, 1], [], []>} : vector<1x128xf32>, vector<128x128xf32>, vector<1x128xf32> -> vector<1x128xf32>
    %211 = arith.mulf %209, %209 : vector<1x128xf32>
    %212 = arith.subf %210, %211 : vector<1x128xf32>
    %cst_173 = arith.constant 0.000000e+00 : f32
    %213 = vector.broadcast %cst_173 : f32 to vector<1x128xf32>
    %214 = arith.maximumf %212, %213 : vector<1x128xf32>
    %cst_174 = arith.constant 9.99999974E-6 : f32
    %215 = vector.broadcast %cst_174 : f32 to vector<1x128xf32>
    %216 = arith.addf %214, %215 : vector<1x128xf32>
    %217 = math.rsqrt %216 : vector<1x128xf32>
    %218 = arith.mulf %168, %217 : vector<1x128xf32>
    %219 = arith.mulf %209, %218 : vector<1x128xf32>
    %220 = arith.subf %169, %219 : vector<1x128xf32>
    %221 = vector.broadcast %218 : vector<1x128xf32> to vector<16x128xf32>
    %222 = arith.mulf %193, %221 : vector<16x128xf32>
    %223 = vector.broadcast %220 : vector<1x128xf32> to vector<16x128xf32>
    %224 = arith.addf %222, %223 : vector<16x128xf32>
    %cst_175 = arith.constant 0.000000e+00 : f32
    %225 = vector.broadcast %cst_175 : f32 to vector<16x128xf32>
    %226 = arith.maximumf %224, %225 : vector<16x128xf32>
    %c1_176 = arith.constant 1 : index
    %c0_177 = arith.constant 0 : index
    %227 = vector.load %arg9[%c1_176, %c0_177] : memref<36x128xf32, #tpu.memory_space<vmem>>, vector<16x128xf32>
    tpu.vector_store %arg9[%c1_176, %c0_177], %226 {strides = array<i32>} : memref<36x128xf32, #tpu.memory_space<vmem>>, vector<16x128xf32>,
    %228 = vector.broadcast %218 : vector<1x128xf32> to vector<16x128xf32>
    %229 = arith.mulf %196, %228 : vector<16x128xf32>
    %230 = vector.broadcast %220 : vector<1x128xf32> to vector<16x128xf32>
    %231 = arith.addf %229, %230 : vector<16x128xf32>
    %cst_178 = arith.constant 0.000000e+00 : f32
    %232 = vector.broadcast %cst_178 : f32 to vector<16x128xf32>
    %233 = arith.maximumf %231, %232 : vector<16x128xf32>
    %c19_179 = arith.constant 19 : index
    %c0_180 = arith.constant 0 : index
    %234 = vector.load %arg9[%c19_179, %c0_180] : memref<36x128xf32, #tpu.memory_space<vmem>>, vector<16x128xf32>
    tpu.vector_store %arg9[%c19_179, %c0_180], %233 {strides = array<i32>} : memref<36x128xf32, #tpu.memory_space<vmem>>, vector<16x128xf32>,
    %c0_181 = arith.constant 0 : index
    %c1_182 = arith.constant 1 : index
    %c0_183 = arith.constant 0 : index
    %c0_184 = arith.constant 0 : index
    %c0_185 = arith.constant 0 : index
    %235 = vector.load %arg10[%c0_181, %c1_182, %c0_183, %c0_184, %c0_185] : memref<1x2x3x128x128xbf16, #tpu.memory_space<vmem>>, vector<1x1x1x128x128xbf16>
    %236 = vector.shape_cast %235 : vector<1x1x1x128x128xbf16> to vector<128x128xbf16>
    %237 = arith.extf %236 : vector<128x128xbf16> to vector<128x128xf32>
    %c0_186 = arith.constant 0 : index
    %c0_187 = arith.constant 0 : index
    %238 = vector.load %arg9[%c0_186, %c0_187] : memref<36x128xf32, #tpu.memory_space<vmem>>, vector<16x128xf32>
    %cst_188 = arith.constant dense<0.000000e+00> : vector<16x128xf32>
    %239 = tpu.matmul %238, %237, %cst_188 {dimension_numbers = #tpu.dot_dimension_numbers<[1], [0], [0], [1], [0, 0, 1, 1], [], []>} : vector<16x128xf32>, vector<128x128xf32>, vector<16x128xf32> -> vector<16x128xf32>
    %c18_189 = arith.constant 18 : index
    %c0_190 = arith.constant 0 : index
    %240 = vector.load %arg9[%c18_189, %c0_190] : memref<36x128xf32, #tpu.memory_space<vmem>>, vector<16x128xf32>
    %cst_191 = arith.constant dense<0.000000e+00> : vector<16x128xf32>
    %241 = tpu.matmul %240, %237, %cst_191 {dimension_numbers = #tpu.dot_dimension_numbers<[1], [0], [0], [1], [0, 0, 1, 1], [], []>} : vector<16x128xf32>, vector<128x128xf32>, vector<16x128xf32> -> vector<16x128xf32>
    %c0_192 = arith.constant 0 : index
    %c1_193 = arith.constant 1 : index
    %c1_194 = arith.constant 1 : index
    %c0_195 = arith.constant 0 : index
    %c0_196 = arith.constant 0 : index
    %242 = vector.load %arg10[%c0_192, %c1_193, %c1_194, %c0_195, %c0_196] : memref<1x2x3x128x128xbf16, #tpu.memory_space<vmem>>, vector<1x1x1x128x128xbf16>
    %243 = vector.shape_cast %242 : vector<1x1x1x128x128xbf16> to vector<128x128xbf16>
    %244 = arith.extf %243 : vector<128x128xbf16> to vector<128x128xf32>
    %c1_197 = arith.constant 1 : index
    %c0_198 = arith.constant 0 : index
    %245 = vector.load %arg9[%c1_197, %c0_198] : memref<36x128xf32, #tpu.memory_space<vmem>>, vector<16x128xf32>
    %cst_199 = arith.constant dense<0.000000e+00> : vector<16x128xf32>
    %246 = tpu.matmul %245, %244, %cst_199 {dimension_numbers = #tpu.dot_dimension_numbers<[1], [0], [0], [1], [0, 0, 1, 1], [], []>} : vector<16x128xf32>, vector<128x128xf32>, vector<16x128xf32> -> vector<16x128xf32>
    %247 = arith.addf %239, %246 : vector<16x128xf32>
    %c19_200 = arith.constant 19 : index
    %c0_201 = arith.constant 0 : index
    %248 = vector.load %arg9[%c19_200, %c0_201] : memref<36x128xf32, #tpu.memory_space<vmem>>, vector<16x128xf32>
    %cst_202 = arith.constant dense<0.000000e+00> : vector<16x128xf32>
    %249 = tpu.matmul %248, %244, %cst_202 {dimension_numbers = #tpu.dot_dimension_numbers<[1], [0], [0], [1], [0, 0, 1, 1], [], []>} : vector<16x128xf32>, vector<128x128xf32>, vector<16x128xf32> -> vector<16x128xf32>
    %250 = arith.addf %241, %249 : vector<16x128xf32>
    %c0_203 = arith.constant 0 : index
    %c1_204 = arith.constant 1 : index
    %c2_205 = arith.constant 2 : index
    %c0_206 = arith.constant 0 : index
    %c0_207 = arith.constant 0 : index
    %251 = vector.load %arg10[%c0_203, %c1_204, %c2_205, %c0_206, %c0_207] : memref<1x2x3x128x128xbf16, #tpu.memory_space<vmem>>, vector<1x1x1x128x128xbf16>
    %252 = vector.shape_cast %251 : vector<1x1x1x128x128xbf16> to vector<128x128xbf16>
    %253 = arith.extf %252 : vector<128x128xbf16> to vector<128x128xf32>
    %c2_208 = arith.constant 2 : index
    %c0_209 = arith.constant 0 : index
    %254 = vector.load %arg9[%c2_208, %c0_209] : memref<36x128xf32, #tpu.memory_space<vmem>>, vector<16x128xf32>
    %cst_210 = arith.constant dense<0.000000e+00> : vector<16x128xf32>
    %255 = tpu.matmul %254, %253, %cst_210 {dimension_numbers = #tpu.dot_dimension_numbers<[1], [0], [0], [1], [0, 0, 1, 1], [], []>} : vector<16x128xf32>, vector<128x128xf32>, vector<16x128xf32> -> vector<16x128xf32>
    %256 = arith.addf %247, %255 : vector<16x128xf32>
    %c20_211 = arith.constant 20 : index
    %c0_212 = arith.constant 0 : index
    %257 = vector.load %arg9[%c20_211, %c0_212] : memref<36x128xf32, #tpu.memory_space<vmem>>, vector<16x128xf32>
    %cst_213 = arith.constant dense<0.000000e+00> : vector<16x128xf32>
    %258 = tpu.matmul %257, %253, %cst_213 {dimension_numbers = #tpu.dot_dimension_numbers<[1], [0], [0], [1], [0, 0, 1, 1], [], []>} : vector<16x128xf32>, vector<128x128xf32>, vector<16x128xf32> -> vector<16x128xf32>
    %259 = arith.addf %250, %258 : vector<16x128xf32>
    %c1_214 = arith.constant 1 : index
    %c0_215 = arith.constant 0 : index
    %260 = vector.load %arg8[%c1_214, %c0_215] : memref<36x128xf32, #tpu.memory_space<vmem>>, vector<16x128xf32>
    %261 = arith.addf %256, %260 : vector<16x128xf32>
    %c19_216 = arith.constant 19 : index
    %c0_217 = arith.constant 0 : index
    %262 = vector.load %arg8[%c19_216, %c0_217] : memref<36x128xf32, #tpu.memory_space<vmem>>, vector<16x128xf32>
    %263 = arith.addf %259, %262 : vector<16x128xf32>
    %cst_218 = arith.constant dense<0.000000e+00> : vector<128xf32>
    %264 = vector.multi_reduction <add>, %261, %cst_218 [0] : vector<16x128xf32> to vector<128xf32>
    %265 = vector.shape_cast %264 : vector<128xf32> to vector<1x128xf32>
    %266 = arith.mulf %261, %261 : vector<16x128xf32>
    %cst_219 = arith.constant dense<0.000000e+00> : vector<128xf32>
    %267 = vector.multi_reduction <add>, %266, %cst_219 [0] : vector<16x128xf32> to vector<128xf32>
    %268 = vector.shape_cast %267 : vector<128xf32> to vector<1x128xf32>
    %cst_220 = arith.constant dense<0.000000e+00> : vector<128xf32>
    %269 = vector.multi_reduction <add>, %263, %cst_220 [0] : vector<16x128xf32> to vector<128xf32>
    %270 = vector.shape_cast %269 : vector<128xf32> to vector<1x128xf32>
    %271 = arith.addf %265, %270 : vector<1x128xf32>
    %272 = arith.mulf %263, %263 : vector<16x128xf32>
    %cst_221 = arith.constant dense<0.000000e+00> : vector<128xf32>
    %273 = vector.multi_reduction <add>, %272, %cst_221 [0] : vector<16x128xf32> to vector<128xf32>
    %274 = vector.shape_cast %273 : vector<128xf32> to vector<1x128xf32>
    %275 = arith.addf %268, %274 : vector<1x128xf32>
    %cst_222 = arith.constant dense<0.000000e+00> : vector<1x128xf32>
    %276 = tpu.matmul %271, %19, %cst_222 {dimension_numbers = #tpu.dot_dimension_numbers<[1], [0], [0], [1], [0, 0, 1, 1], [], []>} : vector<1x128xf32>, vector<128x128xf32>, vector<1x128xf32> -> vector<1x128xf32>
    %cst_223 = arith.constant dense<0.000000e+00> : vector<1x128xf32>
    %277 = tpu.matmul %275, %19, %cst_223 {dimension_numbers = #tpu.dot_dimension_numbers<[1], [0], [0], [1], [0, 0, 1, 1], [], []>} : vector<1x128xf32>, vector<128x128xf32>, vector<1x128xf32> -> vector<1x128xf32>
    %278 = arith.mulf %276, %276 : vector<1x128xf32>
    %279 = arith.subf %277, %278 : vector<1x128xf32>
    %cst_224 = arith.constant 0.000000e+00 : f32
    %280 = vector.broadcast %cst_224 : f32 to vector<1x128xf32>
    %281 = arith.maximumf %279, %280 : vector<1x128xf32>
    %cst_225 = arith.constant 9.99999974E-6 : f32
    %282 = vector.broadcast %cst_225 : f32 to vector<1x128xf32>
    %283 = arith.addf %281, %282 : vector<1x128xf32>
    %284 = math.rsqrt %283 : vector<1x128xf32>
    %285 = arith.mulf %170, %284 : vector<1x128xf32>
    %286 = arith.mulf %276, %285 : vector<1x128xf32>
    %287 = arith.subf %171, %286 : vector<1x128xf32>
    %288 = vector.broadcast %285 : vector<1x128xf32> to vector<16x128xf32>
    %289 = arith.mulf %261, %288 : vector<16x128xf32>
    %290 = vector.broadcast %287 : vector<1x128xf32> to vector<16x128xf32>
    %291 = arith.addf %289, %290 : vector<16x128xf32>
    %cst_226 = arith.constant 0.000000e+00 : f32
    %292 = vector.broadcast %cst_226 : f32 to vector<16x128xf32>
    %293 = arith.maximumf %291, %292 : vector<16x128xf32>
    %c0_227 = arith.constant 0 : index
    %c0_228 = arith.constant 0 : index
    %294 = vector.load %arg7[%c0_227, %c0_228] : memref<32x128xf32, #tpu.memory_space<vmem>>, vector<16x128xf32>
    tpu.vector_store %arg7[%c0_227, %c0_228], %293 {strides = array<i32>} : memref<32x128xf32, #tpu.memory_space<vmem>>, vector<16x128xf32>,
    %295 = vector.broadcast %285 : vector<1x128xf32> to vector<16x128xf32>
    %296 = arith.mulf %263, %295 : vector<16x128xf32>
    %297 = vector.broadcast %287 : vector<1x128xf32> to vector<16x128xf32>
    %298 = arith.addf %296, %297 : vector<16x128xf32>
    %cst_229 = arith.constant 0.000000e+00 : f32
    %299 = vector.broadcast %cst_229 : f32 to vector<16x128xf32>
    %300 = arith.maximumf %298, %299 : vector<16x128xf32>
    %c16_230 = arith.constant 16 : index
    %c0_231 = arith.constant 0 : index
    %301 = vector.load %arg7[%c16_230, %c0_231] : memref<32x128xf32, #tpu.memory_space<vmem>>, vector<16x128xf32>
    tpu.vector_store %arg7[%c16_230, %c0_231], %300 {strides = array<i32>} : memref<32x128xf32, #tpu.memory_space<vmem>>, vector<16x128xf32>,
    return
  }
}

</mosaic_0001>

<llo_original>
// kernel: _lambda_.1
$region0: #{_lambda_.1}
  #allocation0 [shape = 'u32[]', space=smem, size = 0x4, offset = 0x4, fixed_abs, tag = 'smem constant byte address 0x4 - core index']
  #allocation1 [shape = 'u32[72,128]{1,0:T(1,128)}', space=vmem, size = 0x9000, scoped, tag = 'internal scratch']
  #allocation2 [shape = 'f32[36,128]{1,0:T(8,128)}', space=vmem, size = 0x5000, scoped, tag = 'scratch operand']
  #allocation3 [shape = 'f32[36,128]{1,0:T(8,128)}', space=vmem, size = 0x5000, scoped, tag = 'scratch operand']
  #allocation4 [shape = 'bf16[1,2,3,128,128]{4,3,2,1,0:T(8,128)(2,1)}', space=vmem, size = 0x30000, scoped, tag = 'scratch operand']
  #allocation5 [shape = 's32[1]{0}', space=sflag, size = 0x4, scoped, tag = 'scratch operand']
  #allocation6 [shape = 's32[]', space=sflag, size = 0x4, offset = 0, fixed_abs, tag = 'sflag constant byte address 0x0 - dummy sync flag']
  %s0 = inlined_call_operand.vmem [shape: f32[32,128], index: 0, kind: input, shape index: {}]
  %s1 = inlined_call_operand.vmem [shape: bf16[3,128,128], index: 1, kind: input, shape index: {}]
  %s2 = inlined_call_operand.vmem [shape: bf16[3,128,128], index: 2, kind: input, shape index: {}]
  %s3 = inlined_call_operand.vmem [shape: bf16[128,128], index: 3, kind: input, shape index: {}]
  %s4 = inlined_call_operand.vmem [shape: f32[128,128], index: 4, kind: input, shape index: {}]
  %s5 = inlined_call_operand.vmem [shape: f32[2,4,128], index: 5, kind: input, shape index: {}]
  %s6 = inlined_call_operand.vmem [shape: bf16[1,2,3,128,128], index: 6, kind: input, shape index: {}]
  %s7 = inlined_call_operand.vmem [shape: f32[32,128], index: 7, kind: output, shape index: {}]
  %s8 = sld [smem:[#allocation0]]
  $region53: #{_lambda_.1} parent=0
    _
  %s10 = ssub.s32 1, %s8
  %s11 = scalar_select 0, %s10, %s8
  // Predicated region
  $region2: #{_lambda_.1} parent=0 // pred_check
    _
  $region3: #{_lambda_.1} parent=0 // pred_check_branch
    %13 = sbr.rel (0) target = $region5
  $region4: #{_lambda_.1} parent=0 // pred_region
    _
  $region5: #{_lambda_.1} parent=0 // pred_fallthru
    _
  // Predicated region
  $region6: #{_lambda_.1} parent=0 // pred_check
    _
  $region7: #{_lambda_.1} parent=0 // pred_check_branch
    %15 = sbr.rel (0) target = $region9
  $region8: #{_lambda_.1} parent=0 // pred_region
    _
  $region9: #{_lambda_.1} parent=0 // pred_fallthru
    _
  // Predicated region
  $region10: #{_lambda_.1} parent=0 // pred_check
    _
  $region11: #{_lambda_.1} parent=0 // pred_check_branch
    %17 = sbr.rel (0) target = $region13
  $region12: #{_lambda_.1} parent=0 // pred_region
    _
  $region13: #{_lambda_.1} parent=0 // pred_fallthru
    _
  // Predicated region
  $region14: #{_lambda_.1} parent=0 // pred_check
    _
  $region15: #{_lambda_.1} parent=0 // pred_check_branch
    %19 = sbr.rel (0) target = $region17
  $region16: #{_lambda_.1} parent=0 // pred_region
    _
  $region17: #{_lambda_.1} parent=0 // pred_fallthru
    _
  // Predicated region
  $region18: #{_lambda_.1} parent=0 // pred_check
    _
  $region19: #{_lambda_.1} parent=0 // pred_check_branch
    %21 = sbr.rel (0) target = $region21
  $region20: #{_lambda_.1} parent=0 // pred_region
    _
  $region21: #{_lambda_.1} parent=0 // pred_fallthru
    _
  // Predicated region
  $region22: #{_lambda_.1} parent=0 // pred_check
    _
  $region23: #{_lambda_.1} parent=0 // pred_check_branch
    %23 = sbr.rel (0) target = $region25
  $region24: #{_lambda_.1} parent=0 // pred_region
    _
  $region25: #{_lambda_.1} parent=0 // pred_fallthru
    _
  // Predicated region
  $region26: #{_lambda_.1} parent=0 // pred_check
    _
  $region27: #{_lambda_.1} parent=0 // pred_check_branch
    %25 = sbr.rel (0) target = $region29
  $region28: #{_lambda_.1} parent=0 // pred_region
    loop: start=0, step=1, limit=1
    $region30: #{_lambda_.1} parent=28 // loop_pre_header
      _
    $region31: #{_lambda_.1} parent=28 // loop_header
      %s27 = sphi 0, %s31
      %p28 = scmp.ge.s32.totalorder %s27, 1
      %s32 = sphi %s6, %s6
      %s33 = sphi [#allocation4], [#allocation4]
    $region32: #{_lambda_.1} parent=28 // loop_header_branch
      %30 = sbr.rel (%p28) target = $region36
    $region33: #{_lambda_.1} parent=28 // loop_body
      %v34 = vld [vmem:[%s32] sm:$0xff]
      %35 = vst [vmem:[%s33] sm:$0xff] %v34
      %v36 = vld [vmem:[%s32 + $0x8] sm:$0xff]
      %37 = vst [vmem:[%s33 + $0x8] sm:$0xff] %v36
      %v38 = vld [vmem:[%s32 + $0x10] sm:$0xff]
      %39 = vst [vmem:[%s33 + $0x10] sm:$0xff] %v38
      %v40 = vld [vmem:[%s32 + $0x18] sm:$0xff]
      %41 = vst [vmem:[%s33 + $0x18] sm:$0xff] %v40
      %v42 = vld [vmem:[%s32 + $0x20] sm:$0xff]
      %43 = vst [vmem:[%s33 + $0x20] sm:$0xff] %v42
      %v44 = vld [vmem:[%s32 + $0x28] sm:$0xff]
      %45 = vst [vmem:[%s33 + $0x28] sm:$0xff] %v44
      %v46 = vld [vmem:[%s32 + $0x30] sm:$0xff]
      %47 = vst [vmem:[%s33 + $0x30] sm:$0xff] %v46
      %v48 = vld [vmem:[%s32 + $0x38] sm:$0xff]
      %49 = vst [vmem:[%s33 + $0x38] sm:$0xff] %v48
      %v50 = vld [vmem:[%s32 + $0x40] sm:$0xff]
      %51 = vst [vmem:[%s33 + $0x40] sm:$0xff] %v50
      %v52 = vld [vmem:[%s32 + $0x48] sm:$0xff]
      %53 = vst [vmem:[%s33 + $0x48] sm:$0xff] %v52
      %v54 = vld [vmem:[%s32 + $0x50] sm:$0xff]
      %55 = vst [vmem:[%s33 + $0x50] sm:$0xff] %v54
      %v56 = vld [vmem:[%s32 + $0x58] sm:$0xff]
      %57 = vst [vmem:[%s33 + $0x58] sm:$0xff] %v56
      %v58 = vld [vmem:[%s32 + $0x60] sm:$0xff]
      %59 = vst [vmem:[%s33 + $0x60] sm:$0xff] %v58
      %v60 = vld [vmem:[%s32 + $0x68] sm:$0xff]
      %61 = vst [vmem:[%s33 + $0x68] sm:$0xff] %v60
      %v62 = vld [vmem:[%s32 + $0x70] sm:$0xff]
      %63 = vst [vmem:[%s33 + $0x70] sm:$0xff] %v62
      %v64 = vld [vmem:[%s32 + $0x78] sm:$0xff]
      %65 = vst [vmem:[%s33 + $0x78] sm:$0xff] %v64
      %v66 = vld [vmem:[%s32 + $0x80] sm:$0xff]
      %67 = vst [vmem:[%s33 + $0x80] sm:$0xff] %v66
      %v68 = vld [vmem:[%s32 + $0x88] sm:$0xff]
      %69 = vst [vmem:[%s33 + $0x88] sm:$0xff] %v68
      %v70 = vld [vmem:[%s32 + $0x90] sm:$0xff]
      %71 = vst [vmem:[%s33 + $0x90] sm:$0xff] %v70
      %v72 = vld [vmem:[%s32 + $0x98] sm:$0xff]
      %73 = vst [vmem:[%s33 + $0x98] sm:$0xff] %v72
      %v74 = vld [vmem:[%s32 + $0xa0] sm:$0xff]
      %75 = vst [vmem:[%s33 + $0xa0] sm:$0xff] %v74
      %v76 = vld [vmem:[%s32 + $0xa8] sm:$0xff]
      %77 = vst [vmem:[%s33 + $0xa8] sm:$0xff] %v76
      %v78 = vld [vmem:[%s32 + $0xb0] sm:$0xff]
      %79 = vst [vmem:[%s33 + $0xb0] sm:$0xff] %v78
      %v80 = vld [vmem:[%s32 + $0xb8] sm:$0xff]
      %81 = vst [vmem:[%s33 + $0xb8] sm:$0xff] %v80
      %v82 = vld [vmem:[%s32 + $0xc0] sm:$0xff]
      %83 = vst [vmem:[%s33 + $0xc0] sm:$0xff] %v82
      %v84 = vld [vmem:[%s32 + $0xc8] sm:$0xff]
      %85 = vst [vmem:[%s33 + $0xc8] sm:$0xff] %v84
      %v86 = vld [vmem:[%s32 + $0xd0] sm:$0xff]
      %87 = vst [vmem:[%s33 + $0xd0] sm:$0xff] %v86
      %v88 = vld [vmem:[%s32 + $0xd8] sm:$0xff]
      %89 = vst [vmem:[%s33 + $0xd8] sm:$0xff] %v88
      %v90 = vld [vmem:[%s32 + $0xe0] sm:$0xff]
      %91 = vst [vmem:[%s33 + $0xe0] sm:$0xff] %v90
      %v92 = vld [vmem:[%s32 + $0xe8] sm:$0xff]
      %93 = vst [vmem:[%s33 + $0xe8] sm:$0xff] %v92
      %v94 = vld [vmem:[%s32 + $0xf0] sm:$0xff]
      %95 = vst [vmem:[%s33 + $0xf0] sm:$0xff] %v94
      %v96 = vld [vmem:[%s32 + $0xf8] sm:$0xff]
      %97 = vst [vmem:[%s33 + $0xf8] sm:$0xff] %v96
      %v98 = vld [vmem:[%s32 + $0x100] sm:$0xff]
      %99 = vst [vmem:[%s33 + $0x100] sm:$0xff] %v98
      %v100 = vld [vmem:[%s32 + $0x108] sm:$0xff]
      %101 = vst [vmem:[%s33 + $0x108] sm:$0xff] %v100
      %v102 = vld [vmem:[%s32 + $0x110] sm:$0xff]
      %103 = vst [vmem:[%s33 + $0x110] sm:$0xff] %v102
      %v104 = vld [vmem:[%s32 + $0x118] sm:$0xff]
      %105 = vst [vmem:[%s33 + $0x118] sm:$0xff] %v104
      %v106 = vld [vmem:[%s32 + $0x120] sm:$0xff]
      %107 = vst [vmem:[%s33 + $0x120] sm:$0xff] %v106
      %v108 = vld [vmem:[%s32 + $0x128] sm:$0xff]
      %109 = vst [vmem:[%s33 + $0x128] sm:$0xff] %v108
      %v110 = vld [vmem:[%s32 + $0x130] sm:$0xff]
      %111 = vst [vmem:[%s33 + $0x130] sm:$0xff] %v110
      %v112 = vld [vmem:[%s32 + $0x138] sm:$0xff]
      %113 = vst [vmem:[%s33 + $0x138] sm:$0xff] %v112
      %v114 = vld [vmem:[%s32 + $0x140] sm:$0xff]
      %115 = vst [vmem:[%s33 + $0x140] sm:$0xff] %v114
      %v116 = vld [vmem:[%s32 + $0x148] sm:$0xff]
      %117 = vst [vmem:[%s33 + $0x148] sm:$0xff] %v116
      %v118 = vld [vmem:[%s32 + $0x150] sm:$0xff]
      %119 = vst [vmem:[%s33 + $0x150] sm:$0xff] %v118
      %v120 = vld [vmem:[%s32 + $0x158] sm:$0xff]
      %121 = vst [vmem:[%s33 + $0x158] sm:$0xff] %v120
      %v122 = vld [vmem:[%s32 + $0x160] sm:$0xff]
      %123 = vst [vmem:[%s33 + $0x160] sm:$0xff] %v122
      %v124 = vld [vmem:[%s32 + $0x168] sm:$0xff]
      %125 = vst [vmem:[%s33 + $0x168] sm:$0xff] %v124
      %v126 = vld [vmem:[%s32 + $0x170] sm:$0xff]
      %127 = vst [vmem:[%s33 + $0x170] sm:$0xff] %v126
      %v128 = vld [vmem:[%s32 + $0x178] sm:$0xff]
      %129 = vst [vmem:[%s33 + $0x178] sm:$0xff] %v128
    $region34: #{_lambda_.1} parent=28 // loop_footer
      %s31 = sadd.s32 1, %s27
    $region35: #{_lambda_.1} parent=28 // loop_footer_branch
      %26 = sbr.rel target = $region31
    $region36: #{_lambda_.1} parent=28 // loop_exit
      _
  $region29: #{_lambda_.1} parent=0 // pred_fallthru
    _
  // Predicated region
  $region37: #{_lambda_.1} parent=0 // pred_check
    _
  $region38: #{_lambda_.1} parent=0 // pred_check_branch
    %131 = sbr.rel target = $region40
  $region39: #{_lambda_.1} parent=0 // pred_region
    _
  $region40: #{_lambda_.1} parent=0 // pred_fallthru
    _
  // Predicated region
  $region41: #{_lambda_.1} parent=0 // pred_check
    _
  $region42: #{_lambda_.1} parent=0 // pred_check_branch
    %134 = sbr.rel (0) target = $region44
  $region43: #{_lambda_.1} parent=0 // pred_region
    %135 = vsyncadd [#allocation5], 6144
  $region44: #{_lambda_.1} parent=0 // pred_fallthru
    _
  %136 = vst [vmem:[#allocation2] sm:$0x1] 0.0
  %137 = vst [vmem:[#allocation2 + $0x11] sm:$0x1] 0.0
  %138 = vst [vmem:[#allocation3] sm:$0x1] 0.0
  %139 = vst [vmem:[#allocation3 + $0x11] sm:$0x1] 0.0
  %140 = vst [vmem:[#allocation2 + $0x12] sm:$0x1] 0.0
  %141 = vst [vmem:[#allocation2 + $0x23] sm:$0x1] 0.0
  %142 = vst [vmem:[#allocation3 + $0x12] sm:$0x1] 0.0
  %143 = vst [vmem:[#allocation3 + $0x23] sm:$0x1] 0.0
  %v144 = vld [vmem:[%s0] sm:$0xff]
  %v145 = vld [vmem:[%s0 + $0x8] sm:$0xff]
  %146 = vst [vmem:[#allocation2 + $0x1] sm:$0xff] %v144
  %147 = vst [vmem:[#allocation2 + $0x9] sm:$0xff] %v145
  %v148 = vld [vmem:[%s0 + $0x10] sm:$0xff]
  %v149 = vld [vmem:[%s0 + $0x18] sm:$0xff]
  %150 = vst [vmem:[#allocation2 + $0x13] sm:$0xff] %v148
  %151 = vst [vmem:[#allocation2 + $0x1b] sm:$0xff] %v149
  %v152 = vld [vmem:[%s4] sm:$0xff]
  %v153 = vld [vmem:[%s4 + $0x8] sm:$0xff]
  %v154 = vld [vmem:[%s4 + $0x10] sm:$0xff]
  %v155 = vld [vmem:[%s4 + $0x18] sm:$0xff]
  %v156 = vld [vmem:[%s4 + $0x20] sm:$0xff]
  %v157 = vld [vmem:[%s4 + $0x28] sm:$0xff]
  %v158 = vld [vmem:[%s4 + $0x30] sm:$0xff]
  %v159 = vld [vmem:[%s4 + $0x38] sm:$0xff]
  %v160 = vld [vmem:[%s4 + $0x40] sm:$0xff]
  %v161 = vld [vmem:[%s4 + $0x48] sm:$0xff]
  %v162 = vld [vmem:[%s4 + $0x50] sm:$0xff]
  %v163 = vld [vmem:[%s4 + $0x58] sm:$0xff]
  %v164 = vld [vmem:[%s4 + $0x60] sm:$0xff]
  %v165 = vld [vmem:[%s4 + $0x68] sm:$0xff]
  %v166 = vld [vmem:[%s4 + $0x70] sm:$0xff]
  %v167 = vld [vmem:[%s4 + $0x78] sm:$0xff]
  %v168 = vld [vmem:[%s5] sm:$0xf]
  %v169 = vld [vmem:[%s1] sm:$0xf]
  %v170 = vld [vmem:[%s1 + $0x4] sm:$0xf]
  %v171 = vld [vmem:[%s1 + $0x8] sm:$0xf]
  %v172 = vld [vmem:[%s1 + $0xc] sm:$0xf]
  %v173 = vld [vmem:[%s1 + $0x10] sm:$0xf]
  %v174 = vld [vmem:[%s1 + $0x14] sm:$0xf]
  %v175 = vld [vmem:[%s1 + $0x18] sm:$0xf]
  %v176 = vld [vmem:[%s1 + $0x1c] sm:$0xf]
  %v177 = vld [vmem:[%s1 + $0x20] sm:$0xf]
  %v178 = vld [vmem:[%s1 + $0x24] sm:$0xf]
  %v179 = vld [vmem:[%s1 + $0x28] sm:$0xf]
  %v180 = vld [vmem:[%s1 + $0x2c] sm:$0xf]
  %v181 = vld [vmem:[%s1 + $0x30] sm:$0xf]
  %v182 = vld [vmem:[%s1 + $0x34] sm:$0xf]
  %v183 = vld [vmem:[%s1 + $0x38] sm:$0xf]
  %v184 = vld [vmem:[%s1 + $0x3c] sm:$0xf]
  %v185 = vunpack.c.l.bf16 %v169
  %v186 = vunpack.c.l.bf16 %v170
  %v187 = vunpack.c.l.bf16 %v171
  %v188 = vunpack.c.l.bf16 %v172
  %v189 = vunpack.c.l.bf16 %v173
  %v190 = vunpack.c.l.bf16 %v174
  %v191 = vunpack.c.l.bf16 %v175
  %v192 = vunpack.c.l.bf16 %v176
  %v193 = vunpack.c.l.bf16 %v177
  %v194 = vunpack.c.l.bf16 %v178
  %v195 = vunpack.c.l.bf16 %v179
  %v196 = vunpack.c.l.bf16 %v180
  %v197 = vunpack.c.l.bf16 %v181
  %v198 = vunpack.c.l.bf16 %v182
  %v199 = vunpack.c.l.bf16 %v183
  %v200 = vunpack.c.l.bf16 %v184
  %v201 = vld [vmem:[#allocation2] sm:$0xff]
  %v202 = vld [vmem:[#allocation2 + $0x8] sm:$0xff]
  %v203 = vld [vmem:[#allocation2 + $0x12] sm:$0xff]
  %v204 = vld [vmem:[#allocation2 + $0x1a] sm:$0xff]
  %s205 = scalar_lea.vmem %s1, 64
  %v206 = vld [vmem:[%s205] sm:$0xf]
  %v207 = vld [vmem:[%s205 + $0x4] sm:$0xf]
  %v208 = vld [vmem:[%s205 + $0x8] sm:$0xf]
  %v209 = vld [vmem:[%s205 + $0xc] sm:$0xf]
  %v210 = vld [vmem:[%s205 + $0x10] sm:$0xf]
  %v211 = vld [vmem:[%s205 + $0x14] sm:$0xf]
  %v212 = vld [vmem:[%s205 + $0x18] sm:$0xf]
  %v213 = vld [vmem:[%s205 + $0x1c] sm:$0xf]
  %v214 = vld [vmem:[%s205 + $0x20] sm:$0xf]
  %v215 = vld [vmem:[%s205 + $0x24] sm:$0xf]
  %v216 = vld [vmem:[%s205 + $0x28] sm:$0xf]
  %v217 = vld [vmem:[%s205 + $0x2c] sm:$0xf]
  %v218 = vld [vmem:[%s205 + $0x30] sm:$0xf]
  %v219 = vld [vmem:[%s205 + $0x34] sm:$0xf]
  %v220 = vld [vmem:[%s205 + $0x38] sm:$0xf]
  %v221 = vld [vmem:[%s205 + $0x3c] sm:$0xf]
  %v222 = vunpack.c.l.bf16 %v206
  %v223 = vunpack.c.l.bf16 %v207
  %v224 = vunpack.c.l.bf16 %v208
  %v225 = vunpack.c.l.bf16 %v209
  %v226 = vunpack.c.l.bf16 %v210
  %v227 = vunpack.c.l.bf16 %v211
  %v228 = vunpack.c.l.bf16 %v212
  %v229 = vunpack.c.l.bf16 %v213
  %v230 = vunpack.c.l.bf16 %v214
  %v231 = vunpack.c.l.bf16 %v215
  %v232 = vunpack.c.l.bf16 %v216
  %v233 = vunpack.c.l.bf16 %v217
  %v234 = vunpack.c.l.bf16 %v218
  %v235 = vunpack.c.l.bf16 %v219
  %v236 = vunpack.c.l.bf16 %v220
  %v237 = vunpack.c.l.bf16 %v221
  %v238 = vld [vmem:[#allocation2 + $0x1] sm:$0xff]
  %v239 = vld [vmem:[#allocation2 + $0x9] sm:$0xff]
  %240 = vmatpush.msra.mxu0 %v237
  %241 = vmatpush.msra.mxu0 %v236
  %242 = vmatpush.msra.mxu0 %v235
  %243 = vmatpush.msra.mxu0 %v234
  %244 = vmatpush.msra.mxu0 %v233
  %245 = vmatpush.msra.mxu0 %v232
  %246 = vmatpush.msra.mxu0 %v231
  %247 = vmatpush.msra.mxu0 %v230
  %248 = vmatpush.msra.mxu0 %v229
  %249 = vmatpush.msra.mxu0 %v228
  %250 = vmatpush.msra.mxu0 %v227
  %251 = vmatpush.msra.mxu0 %v226
  %252 = vmatpush.msra.mxu0 %v225
  %253 = vmatpush.msra.mxu0 %v224
  %254 = vmatpush.msra.mxu0 %v223
  %255 = vmatpush.msra.mxu0 %v222
  %256 = vmatmul.f32.gmra.mxu0 %v238
  %v257 = vpop.f32.mrf.mxu0
  %v258 = vadd.f32 0.0, %v257
  %259 = vmatmul.f32.gmra.mxu0 %v239
  %v260 = vpop.f32.mrf.mxu0
  %v261 = vadd.f32 0.0, %v260
  %262 = vdwg.mxu0
  %263 = vmatpush.msra.mxu0 %v200
  %264 = vmatpush.msra.mxu0 %v199
  %265 = vmatpush.msra.mxu0 %v198
  %266 = vmatpush.msra.mxu0 %v197
  %267 = vmatpush.msra.mxu0 %v196
  %268 = vmatpush.msra.mxu0 %v195
  %269 = vmatpush.msra.mxu0 %v194
  %270 = vmatpush.msra.mxu0 %v193
  %271 = vmatpush.msra.mxu0 %v192
  %272 = vmatpush.msra.mxu0 %v191
  %273 = vmatpush.msra.mxu0 %v190
  %274 = vmatpush.msra.mxu0 %v189
  %275 = vmatpush.msra.mxu0 %v188
  %276 = vmatpush.msra.mxu0 %v187
  %277 = vmatpush.msra.mxu0 %v186
  %278 = vmatpush.msra.mxu0 %v185
  %279 = vmatmul.f32.gmra.mxu0 %v201
  %v280 = vpop.f32.mrf.mxu0
  %v281 = vadd.f32 %v258, %v280
  %282 = vmatmul.f32.gmra.mxu0 %v202
  %v283 = vpop.f32.mrf.mxu0
  %v284 = vadd.f32 %v261, %v283
  %285 = vdwg.mxu0
  %v286 = vld [vmem:[#allocation2 + $0x13] sm:$0xff]
  %v287 = vld [vmem:[#allocation2 + $0x1b] sm:$0xff]
  %288 = vmatpush.msra.mxu0 %v237
  %289 = vmatpush.msra.mxu0 %v236
  %290 = vmatpush.msra.mxu0 %v235
  %291 = vmatpush.msra.mxu0 %v234
  %292 = vmatpush.msra.mxu0 %v233
  %293 = vmatpush.msra.mxu0 %v232
  %294 = vmatpush.msra.mxu0 %v231
  %295 = vmatpush.msra.mxu0 %v230
  %296 = vmatpush.msra.mxu0 %v229
  %297 = vmatpush.msra.mxu0 %v228
  %298 = vmatpush.msra.mxu0 %v227
  %299 = vmatpush.msra.mxu0 %v226
  %300 = vmatpush.msra.mxu0 %v225
  %301 = vmatpush.msra.mxu0 %v224
  %302 = vmatpush.msra.mxu0 %v223
  %303 = vmatpush.msra.mxu0 %v222
  %304 = vmatmul.f32.gmra.mxu0 %v286
  %v305 = vpop.f32.mrf.mxu0
  %v306 = vadd.f32 0.0, %v305
  %307 = vmatmul.f32.gmra.mxu0 %v287
  %v308 = vpop.f32.mrf.mxu0
  %v309 = vadd.f32 0.0, %v308
  %310 = vdwg.mxu0
  %311 = vmatpush.msra.mxu0 %v200
  %312 = vmatpush.msra.mxu0 %v199
  %313 = vmatpush.msra.mxu0 %v198
  %314 = vmatpush.msra.mxu0 %v197
  %315 = vmatpush.msra.mxu0 %v196
  %316 = vmatpush.msra.mxu0 %v195
  %317 = vmatpush.msra.mxu0 %v194
  %318 = vmatpush.msra.mxu0 %v193
  %319 = vmatpush.msra.mxu0 %v192
  %320 = vmatpush.msra.mxu0 %v191
  %321 = vmatpush.msra.mxu0 %v190
  %322 = vmatpush.msra.mxu0 %v189
  %323 = vmatpush.msra.mxu0 %v188
  %324 = vmatpush.msra.mxu0 %v187
  %325 = vmatpush.msra.mxu0 %v186
  %326 = vmatpush.msra.mxu0 %v185
  %327 = vmatmul.f32.gmra.mxu0 %v203
  %v328 = vpop.f32.mrf.mxu0
  %v329 = vadd.f32 %v306, %v328
  %330 = vmatmul.f32.gmra.mxu0 %v204
  %v331 = vpop.f32.mrf.mxu0
  %v332 = vadd.f32 %v309, %v331
  %333 = vdwg.mxu0
  %s334 = scalar_lea.vmem %s1, 128
  %v335 = vld [vmem:[%s334] sm:$0xf]
  %v336 = vld [vmem:[%s334 + $0x4] sm:$0xf]
  %v337 = vld [vmem:[%s334 + $0x8] sm:$0xf]
  %v338 = vld [vmem:[%s334 + $0xc] sm:$0xf]
  %v339 = vld [vmem:[%s334 + $0x10] sm:$0xf]
  %v340 = vld [vmem:[%s334 + $0x14] sm:$0xf]
  %v341 = vld [vmem:[%s334 + $0x18] sm:$0xf]
  %v342 = vld [vmem:[%s334 + $0x1c] sm:$0xf]
  %v343 = vld [vmem:[%s334 + $0x20] sm:$0xf]
  %v344 = vld [vmem:[%s334 + $0x24] sm:$0xf]
  %v345 = vld [vmem:[%s334 + $0x28] sm:$0xf]
  %v346 = vld [vmem:[%s334 + $0x2c] sm:$0xf]
  %v347 = vld [vmem:[%s334 + $0x30] sm:$0xf]
  %v348 = vld [vmem:[%s334 + $0x34] sm:$0xf]
  %v349 = vld [vmem:[%s334 + $0x38] sm:$0xf]
  %v350 = vld [vmem:[%s334 + $0x3c] sm:$0xf]
  %v351 = vunpack.c.l.bf16 %v335
  %v352 = vunpack.c.l.bf16 %v336
  %v353 = vunpack.c.l.bf16 %v337
  %v354 = vunpack.c.l.bf16 %v338
  %v355 = vunpack.c.l.bf16 %v339
  %v356 = vunpack.c.l.bf16 %v340
  %v357 = vunpack.c.l.bf16 %v341
  %v358 = vunpack.c.l.bf16 %v342
  %v359 = vunpack.c.l.bf16 %v343
  %v360 = vunpack.c.l.bf16 %v344
  %v361 = vunpack.c.l.bf16 %v345
  %v362 = vunpack.c.l.bf16 %v346
  %v363 = vunpack.c.l.bf16 %v347
  %v364 = vunpack.c.l.bf16 %v348
  %v365 = vunpack.c.l.bf16 %v349
  %v366 = vunpack.c.l.bf16 %v350
  %v367 = vld [vmem:[#allocation2 + $0x2] sm:$0xff]
  %v368 = vld [vmem:[#allocation2 + $0xa] sm:$0xff]
  %369 = vmatpush.msra.mxu0 %v366
  %370 = vmatpush.msra.mxu0 %v365
  %371 = vmatpush.msra.mxu0 %v364
  %372 = vmatpush.msra.mxu0 %v363
  %373 = vmatpush.msra.mxu0 %v362
  %374 = vmatpush.msra.mxu0 %v361
  %375 = vmatpush.msra.mxu0 %v360
  %376 = vmatpush.msra.mxu0 %v359
  %377 = vmatpush.msra.mxu0 %v358
  %378 = vmatpush.msra.mxu0 %v357
  %379 = vmatpush.msra.mxu0 %v356
  %380 = vmatpush.msra.mxu0 %v355
  %381 = vmatpush.msra.mxu0 %v354
  %382 = vmatpush.msra.mxu0 %v353
  %383 = vmatpush.msra.mxu0 %v352
  %384 = vmatpush.msra.mxu0 %v351
  %385 = vmatmul.f32.gmra.mxu0 %v367
  %v386 = vpop.f32.mrf.mxu0
  %v387 = vadd.f32 0.0, %v386
  %388 = vmatmul.f32.gmra.mxu0 %v368
  %v389 = vpop.f32.mrf.mxu0
  %v390 = vadd.f32 0.0, %v389
  %391 = vdwg.mxu0
  %v392 = vadd.f32 %v281, %v387
  %v393 = vadd.f32 %v284, %v390
  %v394 = vld [vmem:[#allocation2 + $0x14] sm:$0xff]
  %v395 = vld [vmem:[#allocation2 + $0x1c] sm:$0xff]
  %396 = vmatpush.msra.mxu0 %v366
  %397 = vmatpush.msra.mxu0 %v365
  %398 = vmatpush.msra.mxu0 %v364
  %399 = vmatpush.msra.mxu0 %v363
  %400 = vmatpush.msra.mxu0 %v362
  %401 = vmatpush.msra.mxu0 %v361
  %402 = vmatpush.msra.mxu0 %v360
  %403 = vmatpush.msra.mxu0 %v359
  %404 = vmatpush.msra.mxu0 %v358
  %405 = vmatpush.msra.mxu0 %v357
  %406 = vmatpush.msra.mxu0 %v356
  %407 = vmatpush.msra.mxu0 %v355
  %408 = vmatpush.msra.mxu0 %v354
  %409 = vmatpush.msra.mxu0 %v353
  %410 = vmatpush.msra.mxu0 %v352
  %411 = vmatpush.msra.mxu0 %v351
  %412 = vmatmul.f32.gmra.mxu0 %v394
  %v413 = vpop.f32.mrf.mxu0
  %v414 = vadd.f32 0.0, %v413
  %415 = vmatmul.f32.gmra.mxu0 %v395
  %v416 = vpop.f32.mrf.mxu0
  %v417 = vadd.f32 0.0, %v416
  %418 = vdwg.mxu0
  %v419 = vadd.f32 %v329, %v414
  %v420 = vadd.f32 %v332, %v417
  %v421 = vadd.f32 %v392, %v393
  %v422 = vrot.slane %v421, 4
  %v423 = vadd.f32 %v421, %v422
  %v424 = vrot.slane %v423, 2
  %v425 = vadd.f32 %v423, %v424
  %v426 = vrot.slane %v425, 1
  %v427 = vadd.f32 %v425, %v426
  %v428 = vmul.f32 %v392, %v392
  %v429 = vmul.f32 %v393, %v393
  %v430 = vadd.f32 %v428, %v429
  %v431 = vrot.slane %v430, 4
  %v432 = vadd.f32 %v430, %v431
  %v433 = vrot.slane %v432, 2
  %v434 = vadd.f32 %v432, %v433
  %v435 = vrot.slane %v434, 1
  %v436 = vadd.f32 %v434, %v435
  %v437 = vadd.f32 %v419, %v420
  %v438 = vrot.slane %v437, 4
  %v439 = vadd.f32 %v437, %v438
  %v440 = vrot.slane %v439, 2
  %v441 = vadd.f32 %v439, %v440
  %v442 = vrot.slane %v441, 1
  %v443 = vadd.f32 %v441, %v442
  %v444 = vadd.f32 %v427, %v443
  %v445 = vmul.f32 %v419, %v419
  %v446 = vmul.f32 %v420, %v420
  %v447 = vadd.f32 %v445, %v446
  %v448 = vrot.slane %v447, 4
  %v449 = vadd.f32 %v447, %v448
  %v450 = vrot.slane %v449, 2
  %v451 = vadd.f32 %v449, %v450
  %v452 = vrot.slane %v451, 1
  %v453 = vadd.f32 %v451, %v452
  %v454 = vadd.f32 %v436, %v453
  %455 = vmatpush.msra.mxu0 %v167
  %456 = vmatpush.msra.mxu0 %v166
  %457 = vmatpush.msra.mxu0 %v165
  %458 = vmatpush.msra.mxu0 %v164
  %459 = vmatpush.msra.mxu0 %v163
  %460 = vmatpush.msra.mxu0 %v162
  %461 = vmatpush.msra.mxu0 %v161
  %462 = vmatpush.msra.mxu0 %v160
  %463 = vmatpush.msra.mxu0 %v159
  %464 = vmatpush.msra.mxu0 %v158
  %465 = vmatpush.msra.mxu0 %v157
  %466 = vmatpush.msra.mxu0 %v156
  %467 = vmatpush.msra.mxu0 %v155
  %468 = vmatpush.msra.mxu0 %v154
  %469 = vmatpush.msra.mxu0 %v153
  %470 = vmatpush.msra.mxu0 %v152
  %471 = vmatmul.f32.gmra.mxu0 %v444
  %v472 = vpop.f32.mrf.mxu0
  %v473 = vadd.f32 0.0, %v472
  %474 = vdwg.mxu0
  %475 = vmatpush.msra.mxu0 %v167
  %476 = vmatpush.msra.mxu0 %v166
  %477 = vmatpush.msra.mxu0 %v165
  %478 = vmatpush.msra.mxu0 %v164
  %479 = vmatpush.msra.mxu0 %v163
  %480 = vmatpush.msra.mxu0 %v162
  %481 = vmatpush.msra.mxu0 %v161
  %482 = vmatpush.msra.mxu0 %v160
  %483 = vmatpush.msra.mxu0 %v159
  %484 = vmatpush.msra.mxu0 %v158
  %485 = vmatpush.msra.mxu0 %v157
  %486 = vmatpush.msra.mxu0 %v156
  %487 = vmatpush.msra.mxu0 %v155
  %488 = vmatpush.msra.mxu0 %v154
  %489 = vmatpush.msra.mxu0 %v153
  %490 = vmatpush.msra.mxu0 %v152
  %491 = vmatmul.f32.gmra.mxu0 %v454
  %v492 = vpop.f32.mrf.mxu0
  %v493 = vadd.f32 0.0, %v492
  %494 = vdwg.mxu0
  %v495 = vmul.f32 %v473, %v473
  %v496 = vsub.f32 %v493, %v495
  %v497 = vmax.f32 %v496, 0.0
  %v498 = vadd.f32 %v497, 1e-05
  %v499 = vrsqrt.pop %v498
  %v500 = vmul.f32 %v499, %v498
  %v501 = vmul.f32 %v500, %v499
  %v502 = vmul.f32 0.5, %v501
  %v503 = vsub.f32 1.5, %v502
  %v504 = vmul.f32 %v499, %v503
  %vm505 = vweird.f32 %v498
  %vm506 = vweird.f32 %v499
  %vm507 = vmor %vm505, %vm506
  %v508 = vsel %vm507, %v499, %v504
  %v509 = vmul.f32 %v168, %v508
  %v510 = vmul.f32 %v473, %v509
  %v512 = vrot.slane %v510, 7
  %v514 = vsub.f32 %v168, %v512
  %v515 = vperm.slane %v509, 0
  %v516 = vmul.f32 %v392, %v515
  %v517 = vmul.f32 %v393, %v515
  %v518 = vperm.slane %v514, 1
  %v519 = vadd.f32 %v516, %v518
  %v520 = vadd.f32 %v517, %v518
  %v521 = vmax.f32 %v519, 0.0
  %v522 = vmax.f32 %v520, 0.0
  %523 = vst [vmem:[#allocation3 + $0x1] sm:$0xff] %v521
  %524 = vst [vmem:[#allocation3 + $0x9] sm:$0xff] %v522
  %v525 = vmul.f32 %v419, %v515
  %v526 = vmul.f32 %v420, %v515
  %v527 = vadd.f32 %v525, %v518
  %v528 = vadd.f32 %v526, %v518
  %v529 = vmax.f32 %v527, 0.0
  %v530 = vmax.f32 %v528, 0.0
  %531 = vst [vmem:[#allocation3 + $0x13] sm:$0xff] %v529
  %532 = vst [vmem:[#allocation3 + $0x1b] sm:$0xff] %v530
  %v533 = vld [vmem:[%s2] sm:$0xf]
  %v534 = vld [vmem:[%s2 + $0x4] sm:$0xf]
  %v535 = vld [vmem:[%s2 + $0x8] sm:$0xf]
  %v536 = vld [vmem:[%s2 + $0xc] sm:$0xf]
  %v537 = vld [vmem:[%s2 + $0x10] sm:$0xf]
  %v538 = vld [vmem:[%s2 + $0x14] sm:$0xf]
  %v539 = vld [vmem:[%s2 + $0x18] sm:$0xf]
  %v540 = vld [vmem:[%s2 + $0x1c] sm:$0xf]
  %v541 = vld [vmem:[%s2 + $0x20] sm:$0xf]
  %v542 = vld [vmem:[%s2 + $0x24] sm:$0xf]
  %v543 = vld [vmem:[%s2 + $0x28] sm:$0xf]
  %v544 = vld [vmem:[%s2 + $0x2c] sm:$0xf]
  %v545 = vld [vmem:[%s2 + $0x30] sm:$0xf]
  %v546 = vld [vmem:[%s2 + $0x34] sm:$0xf]
  %v547 = vld [vmem:[%s2 + $0x38] sm:$0xf]
  %v548 = vld [vmem:[%s2 + $0x3c] sm:$0xf]
  %v549 = vunpack.c.l.bf16 %v533
  %v550 = vunpack.c.l.bf16 %v534
  %v551 = vunpack.c.l.bf16 %v535
  %v552 = vunpack.c.l.bf16 %v536
  %v553 = vunpack.c.l.bf16 %v537
  %v554 = vunpack.c.l.bf16 %v538
  %v555 = vunpack.c.l.bf16 %v539
  %v556 = vunpack.c.l.bf16 %v540
  %v557 = vunpack.c.l.bf16 %v541
  %v558 = vunpack.c.l.bf16 %v542
  %v559 = vunpack.c.l.bf16 %v543
  %v560 = vunpack.c.l.bf16 %v544
  %v561 = vunpack.c.l.bf16 %v545
  %v562 = vunpack.c.l.bf16 %v546
  %v563 = vunpack.c.l.bf16 %v547
  %v564 = vunpack.c.l.bf16 %v548
  %v565 = vld [vmem:[#allocation3] sm:$0xff]
  %v566 = vld [vmem:[#allocation3 + $0x8] sm:$0xff]
  %v567 = vld [vmem:[#allocation3 + $0x12] sm:$0xff]
  %v568 = vld [vmem:[#allocation3 + $0x1a] sm:$0xff]
  %s569 = scalar_lea.vmem %s2, 64
  %v570 = vld [vmem:[%s569] sm:$0xf]
  %v571 = vld [vmem:[%s569 + $0x4] sm:$0xf]
  %v572 = vld [vmem:[%s569 + $0x8] sm:$0xf]
  %v573 = vld [vmem:[%s569 + $0xc] sm:$0xf]
  %v574 = vld [vmem:[%s569 + $0x10] sm:$0xf]
  %v575 = vld [vmem:[%s569 + $0x14] sm:$0xf]
  %v576 = vld [vmem:[%s569 + $0x18] sm:$0xf]
  %v577 = vld [vmem:[%s569 + $0x1c] sm:$0xf]
  %v578 = vld [vmem:[%s569 + $0x20] sm:$0xf]
  %v579 = vld [vmem:[%s569 + $0x24] sm:$0xf]
  %v580 = vld [vmem:[%s569 + $0x28] sm:$0xf]
  %v581 = vld [vmem:[%s569 + $0x2c] sm:$0xf]
  %v582 = vld [vmem:[%s569 + $0x30] sm:$0xf]
  %v583 = vld [vmem:[%s569 + $0x34] sm:$0xf]
  %v584 = vld [vmem:[%s569 + $0x38] sm:$0xf]
  %v585 = vld [vmem:[%s569 + $0x3c] sm:$0xf]
  %v586 = vunpack.c.l.bf16 %v570
  %v587 = vunpack.c.l.bf16 %v571
  %v588 = vunpack.c.l.bf16 %v572
  %v589 = vunpack.c.l.bf16 %v573
  %v590 = vunpack.c.l.bf16 %v574
  %v591 = vunpack.c.l.bf16 %v575
  %v592 = vunpack.c.l.bf16 %v576
  %v593 = vunpack.c.l.bf16 %v577
  %v594 = vunpack.c.l.bf16 %v578
  %v595 = vunpack.c.l.bf16 %v579
  %v596 = vunpack.c.l.bf16 %v580
  %v597 = vunpack.c.l.bf16 %v581
  %v598 = vunpack.c.l.bf16 %v582
  %v599 = vunpack.c.l.bf16 %v583
  %v600 = vunpack.c.l.bf16 %v584
  %v601 = vunpack.c.l.bf16 %v585
  %v602 = vld [vmem:[#allocation3 + $0x1] sm:$0xff]
  %v603 = vld [vmem:[#allocation3 + $0x9] sm:$0xff]
  %604 = vmatpush.msra.mxu0 %v601
  %605 = vmatpush.msra.mxu0 %v600
  %606 = vmatpush.msra.mxu0 %v599
  %607 = vmatpush.msra.mxu0 %v598
  %608 = vmatpush.msra.mxu0 %v597
  %609 = vmatpush.msra.mxu0 %v596
  %610 = vmatpush.msra.mxu0 %v595
  %611 = vmatpush.msra.mxu0 %v594
  %612 = vmatpush.msra.mxu0 %v593
  %613 = vmatpush.msra.mxu0 %v592
  %614 = vmatpush.msra.mxu0 %v591
  %615 = vmatpush.msra.mxu0 %v590
  %616 = vmatpush.msra.mxu0 %v589
  %617 = vmatpush.msra.mxu0 %v588
  %618 = vmatpush.msra.mxu0 %v587
  %619 = vmatpush.msra.mxu0 %v586
  %620 = vmatmul.f32.gmra.mxu0 %v602
  %v621 = vpop.f32.mrf.mxu0
  %v622 = vadd.f32 0.0, %v621
  %623 = vmatmul.f32.gmra.mxu0 %v603
  %v624 = vpop.f32.mrf.mxu0
  %v625 = vadd.f32 0.0, %v624
  %626 = vdwg.mxu0
  %627 = vmatpush.msra.mxu0 %v564
  %628 = vmatpush.msra.mxu0 %v563
  %629 = vmatpush.msra.mxu0 %v562
  %630 = vmatpush.msra.mxu0 %v561
  %631 = vmatpush.msra.mxu0 %v560
  %632 = vmatpush.msra.mxu0 %v559
  %633 = vmatpush.msra.mxu0 %v558
  %634 = vmatpush.msra.mxu0 %v557
  %635 = vmatpush.msra.mxu0 %v556
  %636 = vmatpush.msra.mxu0 %v555
  %637 = vmatpush.msra.mxu0 %v554
  %638 = vmatpush.msra.mxu0 %v553
  %639 = vmatpush.msra.mxu0 %v552
  %640 = vmatpush.msra.mxu0 %v551
  %641 = vmatpush.msra.mxu0 %v550
  %642 = vmatpush.msra.mxu0 %v549
  %643 = vmatmul.f32.gmra.mxu0 %v565
  %v644 = vpop.f32.mrf.mxu0
  %v645 = vadd.f32 %v622, %v644
  %646 = vmatmul.f32.gmra.mxu0 %v566
  %v647 = vpop.f32.mrf.mxu0
  %v648 = vadd.f32 %v625, %v647
  %649 = vdwg.mxu0
  %v650 = vld [vmem:[#allocation3 + $0x13] sm:$0xff]
  %v651 = vld [vmem:[#allocation3 + $0x1b] sm:$0xff]
  %652 = vmatpush.msra.mxu0 %v601
  %653 = vmatpush.msra.mxu0 %v600
  %654 = vmatpush.msra.mxu0 %v599
  %655 = vmatpush.msra.mxu0 %v598
  %656 = vmatpush.msra.mxu0 %v597
  %657 = vmatpush.msra.mxu0 %v596
  %658 = vmatpush.msra.mxu0 %v595
  %659 = vmatpush.msra.mxu0 %v594
  %660 = vmatpush.msra.mxu0 %v593
  %661 = vmatpush.msra.mxu0 %v592
  %662 = vmatpush.msra.mxu0 %v591
  %663 = vmatpush.msra.mxu0 %v590
  %664 = vmatpush.msra.mxu0 %v589
  %665 = vmatpush.msra.mxu0 %v588
  %666 = vmatpush.msra.mxu0 %v587
  %667 = vmatpush.msra.mxu0 %v586
  %668 = vmatmul.f32.gmra.mxu0 %v650
  %v669 = vpop.f32.mrf.mxu0
  %v670 = vadd.f32 0.0, %v669
  %671 = vmatmul.f32.gmra.mxu0 %v651
  %v672 = vpop.f32.mrf.mxu0
  %v673 = vadd.f32 0.0, %v672
  %674 = vdwg.mxu0
  %675 = vmatpush.msra.mxu0 %v564
  %676 = vmatpush.msra.mxu0 %v563
  %677 = vmatpush.msra.mxu0 %v562
  %678 = vmatpush.msra.mxu0 %v561
  %679 = vmatpush.msra.mxu0 %v560
  %680 = vmatpush.msra.mxu0 %v559
  %681 = vmatpush.msra.mxu0 %v558
  %682 = vmatpush.msra.mxu0 %v557
  %683 = vmatpush.msra.mxu0 %v556
  %684 = vmatpush.msra.mxu0 %v555
  %685 = vmatpush.msra.mxu0 %v554
  %686 = vmatpush.msra.mxu0 %v553
  %687 = vmatpush.msra.mxu0 %v552
  %688 = vmatpush.msra.mxu0 %v551
  %689 = vmatpush.msra.mxu0 %v550
  %690 = vmatpush.msra.mxu0 %v549
  %691 = vmatmul.f32.gmra.mxu0 %v567
  %v692 = vpop.f32.mrf.mxu0
  %v693 = vadd.f32 %v670, %v692
  %694 = vmatmul.f32.gmra.mxu0 %v568
  %v695 = vpop.f32.mrf.mxu0
  %v696 = vadd.f32 %v673, %v695
  %697 = vdwg.mxu0
  %s698 = scalar_lea.vmem %s2, 128
  %v699 = vld [vmem:[%s698] sm:$0xf]
  %v700 = vld [vmem:[%s698 + $0x4] sm:$0xf]
  %v701 = vld [vmem:[%s698 + $0x8] sm:$0xf]
  %v702 = vld [vmem:[%s698 + $0xc] sm:$0xf]
  %v703 = vld [vmem:[%s698 + $0x10] sm:$0xf]
  %v704 = vld [vmem:[%s698 + $0x14] sm:$0xf]
  %v705 = vld [vmem:[%s698 + $0x18] sm:$0xf]
  %v706 = vld [vmem:[%s698 + $0x1c] sm:$0xf]
  %v707 = vld [vmem:[%s698 + $0x20] sm:$0xf]
  %v708 = vld [vmem:[%s698 + $0x24] sm:$0xf]
  %v709 = vld [vmem:[%s698 + $0x28] sm:$0xf]
  %v710 = vld [vmem:[%s698 + $0x2c] sm:$0xf]
  %v711 = vld [vmem:[%s698 + $0x30] sm:$0xf]
  %v712 = vld [vmem:[%s698 + $0x34] sm:$0xf]
  %v713 = vld [vmem:[%s698 + $0x38] sm:$0xf]
  %v714 = vld [vmem:[%s698 + $0x3c] sm:$0xf]
  %v715 = vunpack.c.l.bf16 %v699
  %v716 = vunpack.c.l.bf16 %v700
  %v717 = vunpack.c.l.bf16 %v701
  %v718 = vunpack.c.l.bf16 %v702
  %v719 = vunpack.c.l.bf16 %v703
  %v720 = vunpack.c.l.bf16 %v704
  %v721 = vunpack.c.l.bf16 %v705
  %v722 = vunpack.c.l.bf16 %v706
  %v723 = vunpack.c.l.bf16 %v707
  %v724 = vunpack.c.l.bf16 %v708
  %v725 = vunpack.c.l.bf16 %v709
  %v726 = vunpack.c.l.bf16 %v710
  %v727 = vunpack.c.l.bf16 %v711
  %v728 = vunpack.c.l.bf16 %v712
  %v729 = vunpack.c.l.bf16 %v713
  %v730 = vunpack.c.l.bf16 %v714
  %v731 = vld [vmem:[#allocation3 + $0x2] sm:$0xff]
  %v732 = vld [vmem:[#allocation3 + $0xa] sm:$0xff]
  %733 = vmatpush.msra.mxu0 %v730
  %734 = vmatpush.msra.mxu0 %v729
  %735 = vmatpush.msra.mxu0 %v728
  %736 = vmatpush.msra.mxu0 %v727
  %737 = vmatpush.msra.mxu0 %v726
  %738 = vmatpush.msra.mxu0 %v725
  %739 = vmatpush.msra.mxu0 %v724
  %740 = vmatpush.msra.mxu0 %v723
  %741 = vmatpush.msra.mxu0 %v722
  %742 = vmatpush.msra.mxu0 %v721
  %743 = vmatpush.msra.mxu0 %v720
  %744 = vmatpush.msra.mxu0 %v719
  %745 = vmatpush.msra.mxu0 %v718
  %746 = vmatpush.msra.mxu0 %v717
  %747 = vmatpush.msra.mxu0 %v716
  %748 = vmatpush.msra.mxu0 %v715
  %749 = vmatmul.f32.gmra.mxu0 %v731
  %v750 = vpop.f32.mrf.mxu0
  %v751 = vadd.f32 0.0, %v750
  %752 = vmatmul.f32.gmra.mxu0 %v732
  %v753 = vpop.f32.mrf.mxu0
  %v754 = vadd.f32 0.0, %v753
  %755 = vdwg.mxu0
  %v756 = vadd.f32 %v645, %v751
  %v757 = vadd.f32 %v648, %v754
  %v758 = vld [vmem:[#allocation3 + $0x14] sm:$0xff]
  %v759 = vld [vmem:[#allocation3 + $0x1c] sm:$0xff]
  %760 = vmatpush.msra.mxu0 %v730
  %761 = vmatpush.msra.mxu0 %v729
  %762 = vmatpush.msra.mxu0 %v728
  %763 = vmatpush.msra.mxu0 %v727
  %764 = vmatpush.msra.mxu0 %v726
  %765 = vmatpush.msra.mxu0 %v725
  %766 = vmatpush.msra.mxu0 %v724
  %767 = vmatpush.msra.mxu0 %v723
  %768 = vmatpush.msra.mxu0 %v722
  %769 = vmatpush.msra.mxu0 %v721
  %770 = vmatpush.msra.mxu0 %v720
  %771 = vmatpush.msra.mxu0 %v719
  %772 = vmatpush.msra.mxu0 %v718
  %773 = vmatpush.msra.mxu0 %v717
  %774 = vmatpush.msra.mxu0 %v716
  %775 = vmatpush.msra.mxu0 %v715
  %776 = vmatmul.f32.gmra.mxu0 %v758
  %v777 = vpop.f32.mrf.mxu0
  %v778 = vadd.f32 0.0, %v777
  %779 = vmatmul.f32.gmra.mxu0 %v759
  %v780 = vpop.f32.mrf.mxu0
  %v781 = vadd.f32 0.0, %v780
  %782 = vdwg.mxu0
  %v783 = vadd.f32 %v693, %v778
  %v784 = vadd.f32 %v696, %v781
  %v785 = vld [vmem:[%s3] sm:$0xf]
  %v786 = vld [vmem:[%s3 + $0x4] sm:$0xf]
  %v787 = vld [vmem:[%s3 + $0x8] sm:$0xf]
  %v788 = vld [vmem:[%s3 + $0xc] sm:$0xf]
  %v789 = vld [vmem:[%s3 + $0x10] sm:$0xf]
  %v790 = vld [vmem:[%s3 + $0x14] sm:$0xf]
  %v791 = vld [vmem:[%s3 + $0x18] sm:$0xf]
  %v792 = vld [vmem:[%s3 + $0x1c] sm:$0xf]
  %v793 = vld [vmem:[%s3 + $0x20] sm:$0xf]
  %v794 = vld [vmem:[%s3 + $0x24] sm:$0xf]
  %v795 = vld [vmem:[%s3 + $0x28] sm:$0xf]
  %v796 = vld [vmem:[%s3 + $0x2c] sm:$0xf]
  %v797 = vld [vmem:[%s3 + $0x30] sm:$0xf]
  %v798 = vld [vmem:[%s3 + $0x34] sm:$0xf]
  %v799 = vld [vmem:[%s3 + $0x38] sm:$0xf]
  %v800 = vld [vmem:[%s3 + $0x3c] sm:$0xf]
  %v801 = vunpack.c.l.bf16 %v785
  %v802 = vunpack.c.l.bf16 %v786
  %v803 = vunpack.c.l.bf16 %v787
  %v804 = vunpack.c.l.bf16 %v788
  %v805 = vunpack.c.l.bf16 %v789
  %v806 = vunpack.c.l.bf16 %v790
  %v807 = vunpack.c.l.bf16 %v791
  %v808 = vunpack.c.l.bf16 %v792
  %v809 = vunpack.c.l.bf16 %v793
  %v810 = vunpack.c.l.bf16 %v794
  %v811 = vunpack.c.l.bf16 %v795
  %v812 = vunpack.c.l.bf16 %v796
  %v813 = vunpack.c.l.bf16 %v797
  %v814 = vunpack.c.l.bf16 %v798
  %v815 = vunpack.c.l.bf16 %v799
  %v816 = vunpack.c.l.bf16 %v800
  %v817 = vld [vmem:[#allocation2 + $0x1] sm:$0xff]
  %v818 = vld [vmem:[#allocation2 + $0x9] sm:$0xff]
  %819 = vmatpush.msra.mxu0 %v816
  %820 = vmatpush.msra.mxu0 %v815
  %821 = vmatpush.msra.mxu0 %v814
  %822 = vmatpush.msra.mxu0 %v813
  %823 = vmatpush.msra.mxu0 %v812
  %824 = vmatpush.msra.mxu0 %v811
  %825 = vmatpush.msra.mxu0 %v810
  %826 = vmatpush.msra.mxu0 %v809
  %827 = vmatpush.msra.mxu0 %v808
  %828 = vmatpush.msra.mxu0 %v807
  %829 = vmatpush.msra.mxu0 %v806
  %830 = vmatpush.msra.mxu0 %v805
  %831 = vmatpush.msra.mxu0 %v804
  %832 = vmatpush.msra.mxu0 %v803
  %833 = vmatpush.msra.mxu0 %v802
  %834 = vmatpush.msra.mxu0 %v801
  %835 = vmatmul.f32.gmra.mxu0 %v817
  %v836 = vpop.f32.mrf.mxu0
  %v837 = vadd.f32 0.0, %v836
  %838 = vmatmul.f32.gmra.mxu0 %v818
  %v839 = vpop.f32.mrf.mxu0
  %v840 = vadd.f32 0.0, %v839
  %841 = vdwg.mxu0
  %v842 = vadd.f32 %v756, %v837
  %v843 = vadd.f32 %v757, %v840
  %v844 = vld [vmem:[#allocation2 + $0x13] sm:$0xff]
  %v845 = vld [vmem:[#allocation2 + $0x1b] sm:$0xff]
  %846 = vmatpush.msra.mxu0 %v816
  %847 = vmatpush.msra.mxu0 %v815
  %848 = vmatpush.msra.mxu0 %v814
  %849 = vmatpush.msra.mxu0 %v813
  %850 = vmatpush.msra.mxu0 %v812
  %851 = vmatpush.msra.mxu0 %v811
  %852 = vmatpush.msra.mxu0 %v810
  %853 = vmatpush.msra.mxu0 %v809
  %854 = vmatpush.msra.mxu0 %v808
  %855 = vmatpush.msra.mxu0 %v807
  %856 = vmatpush.msra.mxu0 %v806
  %857 = vmatpush.msra.mxu0 %v805
  %858 = vmatpush.msra.mxu0 %v804
  %859 = vmatpush.msra.mxu0 %v803
  %860 = vmatpush.msra.mxu0 %v802
  %861 = vmatpush.msra.mxu0 %v801
  %862 = vmatmul.f32.gmra.mxu0 %v844
  %v863 = vpop.f32.mrf.mxu0
  %v864 = vadd.f32 0.0, %v863
  %865 = vmatmul.f32.gmra.mxu0 %v845
  %v866 = vpop.f32.mrf.mxu0
  %v867 = vadd.f32 0.0, %v866
  %868 = vdwg.mxu0
  %v869 = vadd.f32 %v783, %v864
  %v870 = vadd.f32 %v784, %v867
  %v871 = vadd.f32 %v842, %v843
  %v872 = vrot.slane %v871, 4
  %v873 = vadd.f32 %v871, %v872
  %v874 = vrot.slane %v873, 2
  %v875 = vadd.f32 %v873, %v874
  %v876 = vrot.slane %v875, 1
  %v877 = vadd.f32 %v875, %v876
  %v878 = vmul.f32 %v842, %v842
  %v879 = vmul.f32 %v843, %v843
  %v880 = vadd.f32 %v878, %v879
  %v881 = vrot.slane %v880, 4
  %v882 = vadd.f32 %v880, %v881
  %v883 = vrot.slane %v882, 2
  %v884 = vadd.f32 %v882, %v883
  %v885 = vrot.slane %v884, 1
  %v886 = vadd.f32 %v884, %v885
  %v887 = vadd.f32 %v869, %v870
  %v888 = vrot.slane %v887, 4
  %v889 = vadd.f32 %v887, %v888
  %v890 = vrot.slane %v889, 2
  %v891 = vadd.f32 %v889, %v890
  %v892 = vrot.slane %v891, 1
  %v893 = vadd.f32 %v891, %v892
  %v894 = vadd.f32 %v877, %v893
  %v895 = vmul.f32 %v869, %v869
  %v896 = vmul.f32 %v870, %v870
  %v897 = vadd.f32 %v895, %v896
  %v898 = vrot.slane %v897, 4
  %v899 = vadd.f32 %v897, %v898
  %v900 = vrot.slane %v899, 2
  %v901 = vadd.f32 %v899, %v900
  %v902 = vrot.slane %v901, 1
  %v903 = vadd.f32 %v901, %v902
  %v904 = vadd.f32 %v886, %v903
  %905 = vmatpush.msra.mxu0 %v167
  %906 = vmatpush.msra.mxu0 %v166
  %907 = vmatpush.msra.mxu0 %v165
  %908 = vmatpush.msra.mxu0 %v164
  %909 = vmatpush.msra.mxu0 %v163
  %910 = vmatpush.msra.mxu0 %v162
  %911 = vmatpush.msra.mxu0 %v161
  %912 = vmatpush.msra.mxu0 %v160
  %913 = vmatpush.msra.mxu0 %v159
  %914 = vmatpush.msra.mxu0 %v158
  %915 = vmatpush.msra.mxu0 %v157
  %916 = vmatpush.msra.mxu0 %v156
  %917 = vmatpush.msra.mxu0 %v155
  %918 = vmatpush.msra.mxu0 %v154
  %919 = vmatpush.msra.mxu0 %v153
  %920 = vmatpush.msra.mxu0 %v152
  %921 = vmatmul.f32.gmra.mxu0 %v894
  %v922 = vpop.f32.mrf.mxu0
  %v923 = vadd.f32 0.0, %v922
  %924 = vdwg.mxu0
  %925 = vmatpush.msra.mxu0 %v167
  %926 = vmatpush.msra.mxu0 %v166
  %927 = vmatpush.msra.mxu0 %v165
  %928 = vmatpush.msra.mxu0 %v164
  %929 = vmatpush.msra.mxu0 %v163
  %930 = vmatpush.msra.mxu0 %v162
  %931 = vmatpush.msra.mxu0 %v161
  %932 = vmatpush.msra.mxu0 %v160
  %933 = vmatpush.msra.mxu0 %v159
  %934 = vmatpush.msra.mxu0 %v158
  %935 = vmatpush.msra.mxu0 %v157
  %936 = vmatpush.msra.mxu0 %v156
  %937 = vmatpush.msra.mxu0 %v155
  %938 = vmatpush.msra.mxu0 %v154
  %939 = vmatpush.msra.mxu0 %v153
  %940 = vmatpush.msra.mxu0 %v152
  %941 = vmatmul.f32.gmra.mxu0 %v904
  %v942 = vpop.f32.mrf.mxu0
  %v943 = vadd.f32 0.0, %v942
  %944 = vdwg.mxu0
  %v945 = vmul.f32 %v923, %v923
  %v946 = vsub.f32 %v943, %v945
  %v947 = vmax.f32 %v946, 0.0
  %v948 = vadd.f32 %v947, 1e-05
  %v949 = vrsqrt.pop %v948
  %v950 = vmul.f32 %v949, %v948
  %v951 = vmul.f32 %v950, %v949
  %v952 = vmul.f32 0.5, %v951
  %v953 = vsub.f32 1.5, %v952
  %v954 = vmul.f32 %v949, %v953
  %vm955 = vweird.f32 %v948
  %vm956 = vweird.f32 %v949
  %vm957 = vmor %vm955, %vm956
  %v958 = vsel %vm957, %v949, %v954
  %v960 = vrot.slane %v958, 6
  %v962 = vmul.f32 %v168, %v960
  %v964 = vrot.slane %v962, 2
  %v966 = vmul.f32 %v923, %v964
  %v968 = vrot.slane %v966, 5
  %v970 = vsub.f32 %v168, %v968
  %v971 = vperm.slane %v962, 2
  %v972 = vmul.f32 %v842, %v971
  %v973 = vmul.f32 %v843, %v971
  %v974 = vperm.slane %v970, 3
  %v975 = vadd.f32 %v972, %v974
  %v976 = vadd.f32 %v973, %v974
  %v977 = vmax.f32 %v975, 0.0
  %v978 = vmax.f32 %v976, 0.0
  %979 = vst [vmem:[#allocation2 + $0x1] sm:$0xff] %v977
  %980 = vst [vmem:[#allocation2 + $0x9] sm:$0xff] %v978
  %v981 = vmul.f32 %v869, %v971
  %v982 = vmul.f32 %v870, %v971
  %v983 = vadd.f32 %v981, %v974
  %v984 = vadd.f32 %v982, %v974
  %v985 = vmax.f32 %v983, 0.0
  %v986 = vmax.f32 %v984, 0.0
  %987 = vst [vmem:[#allocation2 + $0x13] sm:$0xff] %v985
  %988 = vst [vmem:[#allocation2 + $0x1b] sm:$0xff] %v986
  %s989 = smul.u32 4, 2
  %s990 = smul.u32 %s989, 3
  %s991 = smul.u32 %s990, 16
  %s992 = smul.u32 %s991, 1
  %s993 = sshll.u32 %s992, 4
  %994 = dma.done [#allocation5], %s993
  %s995 = scalar_lea.vmem %s5, 4
  %v996 = vld [vmem:[%s995] sm:$0xf]
  %v997 = vld [vmem:[#allocation4] sm:$0xf]
  %v998 = vld [vmem:[#allocation4 + $0x4] sm:$0xf]
  %v999 = vld [vmem:[#allocation4 + $0x8] sm:$0xf]
  %v1000 = vld [vmem:[#allocation4 + $0xc] sm:$0xf]
  %v1001 = vld [vmem:[#allocation4 + $0x10] sm:$0xf]
  %v1002 = vld [vmem:[#allocation4 + $0x14] sm:$0xf]
  %v1003 = vld [vmem:[#allocation4 + $0x18] sm:$0xf]
  %v1004 = vld [vmem:[#allocation4 + $0x1c] sm:$0xf]
  %v1005 = vld [vmem:[#allocation4 + $0x20] sm:$0xf]
  %v1006 = vld [vmem:[#allocation4 + $0x24] sm:$0xf]
  %v1007 = vld [vmem:[#allocation4 + $0x28] sm:$0xf]
  %v1008 = vld [vmem:[#allocation4 + $0x2c] sm:$0xf]
  %v1009 = vld [vmem:[#allocation4 + $0x30] sm:$0xf]
  %v1010 = vld [vmem:[#allocation4 + $0x34] sm:$0xf]
  %v1011 = vld [vmem:[#allocation4 + $0x38] sm:$0xf]
  %v1012 = vld [vmem:[#allocation4 + $0x3c] sm:$0xf]
  %v1013 = vunpack.c.l.bf16 %v997
  %v1014 = vunpack.c.l.bf16 %v998
  %v1015 = vunpack.c.l.bf16 %v999
  %v1016 = vunpack.c.l.bf16 %v1000
  %v1017 = vunpack.c.l.bf16 %v1001
  %v1018 = vunpack.c.l.bf16 %v1002
  %v1019 = vunpack.c.l.bf16 %v1003
  %v1020 = vunpack.c.l.bf16 %v1004
  %v1021 = vunpack.c.l.bf16 %v1005
  %v1022 = vunpack.c.l.bf16 %v1006
  %v1023 = vunpack.c.l.bf16 %v1007
  %v1024 = vunpack.c.l.bf16 %v1008
  %v1025 = vunpack.c.l.bf16 %v1009
  %v1026 = vunpack.c.l.bf16 %v1010
  %v1027 = vunpack.c.l.bf16 %v1011
  %v1028 = vunpack.c.l.bf16 %v1012
  %v1029 = vld [vmem:[#allocation2] sm:$0xff]
  %v1030 = vld [vmem:[#allocation2 + $0x8] sm:$0xff]
  %v1031 = vld [vmem:[#allocation2 + $0x12] sm:$0xff]
  %v1032 = vld [vmem:[#allocation2 + $0x1a] sm:$0xff]
  %s1033 = scalar_lea.vmem [#allocation4], 64
  %v1034 = vld [vmem:[%s1033] sm:$0xf]
  %v1035 = vld [vmem:[%s1033 + $0x4] sm:$0xf]
  %v1036 = vld [vmem:[%s1033 + $0x8] sm:$0xf]
  %v1037 = vld [vmem:[%s1033 + $0xc] sm:$0xf]
  %v1038 = vld [vmem:[%s1033 + $0x10] sm:$0xf]
  %v1039 = vld [vmem:[%s1033 + $0x14] sm:$0xf]
  %v1040 = vld [vmem:[%s1033 + $0x18] sm:$0xf]
  %v1041 = vld [vmem:[%s1033 + $0x1c] sm:$0xf]
  %v1042 = vld [vmem:[%s1033 + $0x20] sm:$0xf]
  %v1043 = vld [vmem:[%s1033 + $0x24] sm:$0xf]
  %v1044 = vld [vmem:[%s1033 + $0x28] sm:$0xf]
  %v1045 = vld [vmem:[%s1033 + $0x2c] sm:$0xf]
  %v1046 = vld [vmem:[%s1033 + $0x30] sm:$0xf]
  %v1047 = vld [vmem:[%s1033 + $0x34] sm:$0xf]
  %v1048 = vld [vmem:[%s1033 + $0x38] sm:$0xf]
  %v1049 = vld [vmem:[%s1033 + $0x3c] sm:$0xf]
  %v1050 = vunpack.c.l.bf16 %v1034
  %v1051 = vunpack.c.l.bf16 %v1035
  %v1052 = vunpack.c.l.bf16 %v1036
  %v1053 = vunpack.c.l.bf16 %v1037
  %v1054 = vunpack.c.l.bf16 %v1038
  %v1055 = vunpack.c.l.bf16 %v1039
  %v1056 = vunpack.c.l.bf16 %v1040
  %v1057 = vunpack.c.l.bf16 %v1041
  %v1058 = vunpack.c.l.bf16 %v1042
  %v1059 = vunpack.c.l.bf16 %v1043
  %v1060 = vunpack.c.l.bf16 %v1044
  %v1061 = vunpack.c.l.bf16 %v1045
  %v1062 = vunpack.c.l.bf16 %v1046
  %v1063 = vunpack.c.l.bf16 %v1047
  %v1064 = vunpack.c.l.bf16 %v1048
  %v1065 = vunpack.c.l.bf16 %v1049
  %v1066 = vld [vmem:[#allocation2 + $0x1] sm:$0xff]
  %v1067 = vld [vmem:[#allocation2 + $0x9] sm:$0xff]
  %1068 = vmatpush.msra.mxu0 %v1065
  %1069 = vmatpush.msra.mxu0 %v1064
  %1070 = vmatpush.msra.mxu0 %v1063
  %1071 = vmatpush.msra.mxu0 %v1062
  %1072 = vmatpush.msra.mxu0 %v1061
  %1073 = vmatpush.msra.mxu0 %v1060
  %1074 = vmatpush.msra.mxu0 %v1059
  %1075 = vmatpush.msra.mxu0 %v1058
  %1076 = vmatpush.msra.mxu0 %v1057
  %1077 = vmatpush.msra.mxu0 %v1056
  %1078 = vmatpush.msra.mxu0 %v1055
  %1079 = vmatpush.msra.mxu0 %v1054
  %1080 = vmatpush.msra.mxu0 %v1053
  %1081 = vmatpush.msra.mxu0 %v1052
  %1082 = vmatpush.msra.mxu0 %v1051
  %1083 = vmatpush.msra.mxu0 %v1050
  %1084 = vmatmul.f32.gmra.mxu0 %v1066
  %v1085 = vpop.f32.mrf.mxu0
  %v1086 = vadd.f32 0.0, %v1085
  %1087 = vmatmul.f32.gmra.mxu0 %v1067
  %v1088 = vpop.f32.mrf.mxu0
  %v1089 = vadd.f32 0.0, %v1088
  %1090 = vdwg.mxu0
  %1091 = vmatpush.msra.mxu0 %v1028
  %1092 = vmatpush.msra.mxu0 %v1027
  %1093 = vmatpush.msra.mxu0 %v1026
  %1094 = vmatpush.msra.mxu0 %v1025
  %1095 = vmatpush.msra.mxu0 %v1024
  %1096 = vmatpush.msra.mxu0 %v1023
  %1097 = vmatpush.msra.mxu0 %v1022
  %1098 = vmatpush.msra.mxu0 %v1021
  %1099 = vmatpush.msra.mxu0 %v1020
  %1100 = vmatpush.msra.mxu0 %v1019
  %1101 = vmatpush.msra.mxu0 %v1018
  %1102 = vmatpush.msra.mxu0 %v1017
  %1103 = vmatpush.msra.mxu0 %v1016
  %1104 = vmatpush.msra.mxu0 %v1015
  %1105 = vmatpush.msra.mxu0 %v1014
  %1106 = vmatpush.msra.mxu0 %v1013
  %1107 = vmatmul.f32.gmra.mxu0 %v1029
  %v1108 = vpop.f32.mrf.mxu0
  %v1109 = vadd.f32 %v1086, %v1108
  %1110 = vmatmul.f32.gmra.mxu0 %v1030
  %v1111 = vpop.f32.mrf.mxu0
  %v1112 = vadd.f32 %v1089, %v1111
  %1113 = vdwg.mxu0
  %v1114 = vld [vmem:[#allocation2 + $0x13] sm:$0xff]
  %v1115 = vld [vmem:[#allocation2 + $0x1b] sm:$0xff]
  %1116 = vmatpush.msra.mxu0 %v1065
  %1117 = vmatpush.msra.mxu0 %v1064
  %1118 = vmatpush.msra.mxu0 %v1063
  %1119 = vmatpush.msra.mxu0 %v1062
  %1120 = vmatpush.msra.mxu0 %v1061
  %1121 = vmatpush.msra.mxu0 %v1060
  %1122 = vmatpush.msra.mxu0 %v1059
  %1123 = vmatpush.msra.mxu0 %v1058
  %1124 = vmatpush.msra.mxu0 %v1057
  %1125 = vmatpush.msra.mxu0 %v1056
  %1126 = vmatpush.msra.mxu0 %v1055
  %1127 = vmatpush.msra.mxu0 %v1054
  %1128 = vmatpush.msra.mxu0 %v1053
  %1129 = vmatpush.msra.mxu0 %v1052
  %1130 = vmatpush.msra.mxu0 %v1051
  %1131 = vmatpush.msra.mxu0 %v1050
  %1132 = vmatmul.f32.gmra.mxu0 %v1114
  %v1133 = vpop.f32.mrf.mxu0
  %v1134 = vadd.f32 0.0, %v1133
  %1135 = vmatmul.f32.gmra.mxu0 %v1115
  %v1136 = vpop.f32.mrf.mxu0
  %v1137 = vadd.f32 0.0, %v1136
  %1138 = vdwg.mxu0
  %1139 = vmatpush.msra.mxu0 %v1028
  %1140 = vmatpush.msra.mxu0 %v1027
  %1141 = vmatpush.msra.mxu0 %v1026
  %1142 = vmatpush.msra.mxu0 %v1025
  %1143 = vmatpush.msra.mxu0 %v1024
  %1144 = vmatpush.msra.mxu0 %v1023
  %1145 = vmatpush.msra.mxu0 %v1022
  %1146 = vmatpush.msra.mxu0 %v1021
  %1147 = vmatpush.msra.mxu0 %v1020
  %1148 = vmatpush.msra.mxu0 %v1019
  %1149 = vmatpush.msra.mxu0 %v1018
  %1150 = vmatpush.msra.mxu0 %v1017
  %1151 = vmatpush.msra.mxu0 %v1016
  %1152 = vmatpush.msra.mxu0 %v1015
  %1153 = vmatpush.msra.mxu0 %v1014
  %1154 = vmatpush.msra.mxu0 %v1013
  %1155 = vmatmul.f32.gmra.mxu0 %v1031
  %v1156 = vpop.f32.mrf.mxu0
  %v1157 = vadd.f32 %v1134, %v1156
  %1158 = vmatmul.f32.gmra.mxu0 %v1032
  %v1159 = vpop.f32.mrf.mxu0
  %v1160 = vadd.f32 %v1137, %v1159
  %1161 = vdwg.mxu0
  %s1162 = scalar_lea.vmem [#allocation4], 128
  %v1163 = vld [vmem:[%s1162] sm:$0xf]
  %v1164 = vld [vmem:[%s1162 + $0x4] sm:$0xf]
  %v1165 = vld [vmem:[%s1162 + $0x8] sm:$0xf]
  %v1166 = vld [vmem:[%s1162 + $0xc] sm:$0xf]
  %v1167 = vld [vmem:[%s1162 + $0x10] sm:$0xf]
  %v1168 = vld [vmem:[%s1162 + $0x14] sm:$0xf]
  %v1169 = vld [vmem:[%s1162 + $0x18] sm:$0xf]
  %v1170 = vld [vmem:[%s1162 + $0x1c] sm:$0xf]
  %v1171 = vld [vmem:[%s1162 + $0x20] sm:$0xf]
  %v1172 = vld [vmem:[%s1162 + $0x24] sm:$0xf]
  %v1173 = vld [vmem:[%s1162 + $0x28] sm:$0xf]
  %v1174 = vld [vmem:[%s1162 + $0x2c] sm:$0xf]
  %v1175 = vld [vmem:[%s1162 + $0x30] sm:$0xf]
  %v1176 = vld [vmem:[%s1162 + $0x34] sm:$0xf]
  %v1177 = vld [vmem:[%s1162 + $0x38] sm:$0xf]
  %v1178 = vld [vmem:[%s1162 + $0x3c] sm:$0xf]
  %v1179 = vunpack.c.l.bf16 %v1163
  %v1180 = vunpack.c.l.bf16 %v1164
  %v1181 = vunpack.c.l.bf16 %v1165
  %v1182 = vunpack.c.l.bf16 %v1166
  %v1183 = vunpack.c.l.bf16 %v1167
  %v1184 = vunpack.c.l.bf16 %v1168
  %v1185 = vunpack.c.l.bf16 %v1169
  %v1186 = vunpack.c.l.bf16 %v1170
  %v1187 = vunpack.c.l.bf16 %v1171
  %v1188 = vunpack.c.l.bf16 %v1172
  %v1189 = vunpack.c.l.bf16 %v1173
  %v1190 = vunpack.c.l.bf16 %v1174
  %v1191 = vunpack.c.l.bf16 %v1175
  %v1192 = vunpack.c.l.bf16 %v1176
  %v1193 = vunpack.c.l.bf16 %v1177
  %v1194 = vunpack.c.l.bf16 %v1178
  %v1195 = vld [vmem:[#allocation2 + $0x2] sm:$0xff]
  %v1196 = vld [vmem:[#allocation2 + $0xa] sm:$0xff]
  %1197 = vmatpush.msra.mxu0 %v1194
  %1198 = vmatpush.msra.mxu0 %v1193
  %1199 = vmatpush.msra.mxu0 %v1192
  %1200 = vmatpush.msra.mxu0 %v1191
  %1201 = vmatpush.msra.mxu0 %v1190
  %1202 = vmatpush.msra.mxu0 %v1189
  %1203 = vmatpush.msra.mxu0 %v1188
  %1204 = vmatpush.msra.mxu0 %v1187
  %1205 = vmatpush.msra.mxu0 %v1186
  %1206 = vmatpush.msra.mxu0 %v1185
  %1207 = vmatpush.msra.mxu0 %v1184
  %1208 = vmatpush.msra.mxu0 %v1183
  %1209 = vmatpush.msra.mxu0 %v1182
  %1210 = vmatpush.msra.mxu0 %v1181
  %1211 = vmatpush.msra.mxu0 %v1180
  %1212 = vmatpush.msra.mxu0 %v1179
  %1213 = vmatmul.f32.gmra.mxu0 %v1195
  %v1214 = vpop.f32.mrf.mxu0
  %v1215 = vadd.f32 0.0, %v1214
  %1216 = vmatmul.f32.gmra.mxu0 %v1196
  %v1217 = vpop.f32.mrf.mxu0
  %v1218 = vadd.f32 0.0, %v1217
  %1219 = vdwg.mxu0
  %v1220 = vadd.f32 %v1109, %v1215
  %v1221 = vadd.f32 %v1112, %v1218
  %v1222 = vld [vmem:[#allocation2 + $0x14] sm:$0xff]
  %v1223 = vld [vmem:[#allocation2 + $0x1c] sm:$0xff]
  %1224 = vmatpush.msra.mxu0 %v1194
  %1225 = vmatpush.msra.mxu0 %v1193
  %1226 = vmatpush.msra.mxu0 %v1192
  %1227 = vmatpush.msra.mxu0 %v1191
  %1228 = vmatpush.msra.mxu0 %v1190
  %1229 = vmatpush.msra.mxu0 %v1189
  %1230 = vmatpush.msra.mxu0 %v1188
  %1231 = vmatpush.msra.mxu0 %v1187
  %1232 = vmatpush.msra.mxu0 %v1186
  %1233 = vmatpush.msra.mxu0 %v1185
  %1234 = vmatpush.msra.mxu0 %v1184
  %1235 = vmatpush.msra.mxu0 %v1183
  %1236 = vmatpush.msra.mxu0 %v1182
  %1237 = vmatpush.msra.mxu0 %v1181
  %1238 = vmatpush.msra.mxu0 %v1180
  %1239 = vmatpush.msra.mxu0 %v1179
  %1240 = vmatmul.f32.gmra.mxu0 %v1222
  %v1241 = vpop.f32.mrf.mxu0
  %v1242 = vadd.f32 0.0, %v1241
  %1243 = vmatmul.f32.gmra.mxu0 %v1223
  %v1244 = vpop.f32.mrf.mxu0
  %v1245 = vadd.f32 0.0, %v1244
  %1246 = vdwg.mxu0
  %v1247 = vadd.f32 %v1157, %v1242
  %v1248 = vadd.f32 %v1160, %v1245
  %v1249 = vadd.f32 %v1220, %v1221
  %v1250 = vrot.slane %v1249, 4
  %v1251 = vadd.f32 %v1249, %v1250
  %v1252 = vrot.slane %v1251, 2
  %v1253 = vadd.f32 %v1251, %v1252
  %v1254 = vrot.slane %v1253, 1
  %v1255 = vadd.f32 %v1253, %v1254
  %v1256 = vmul.f32 %v1220, %v1220
  %v1257 = vmul.f32 %v1221, %v1221
  %v1258 = vadd.f32 %v1256, %v1257
  %v1259 = vrot.slane %v1258, 4
  %v1260 = vadd.f32 %v1258, %v1259
  %v1261 = vrot.slane %v1260, 2
  %v1262 = vadd.f32 %v1260, %v1261
  %v1263 = vrot.slane %v1262, 1
  %v1264 = vadd.f32 %v1262, %v1263
  %v1265 = vadd.f32 %v1247, %v1248
  %v1266 = vrot.slane %v1265, 4
  %v1267 = vadd.f32 %v1265, %v1266
  %v1268 = vrot.slane %v1267, 2
  %v1269 = vadd.f32 %v1267, %v1268
  %v1270 = vrot.slane %v1269, 1
  %v1271 = vadd.f32 %v1269, %v1270
  %v1272 = vadd.f32 %v1255, %v1271
  %v1273 = vmul.f32 %v1247, %v1247
  %v1274 = vmul.f32 %v1248, %v1248
  %v1275 = vadd.f32 %v1273, %v1274
  %v1276 = vrot.slane %v1275, 4
  %v1277 = vadd.f32 %v1275, %v1276
  %v1278 = vrot.slane %v1277, 2
  %v1279 = vadd.f32 %v1277, %v1278
  %v1280 = vrot.slane %v1279, 1
  %v1281 = vadd.f32 %v1279, %v1280
  %v1282 = vadd.f32 %v1264, %v1281
  %1283 = vmatpush.msra.mxu0 %v167
  %1284 = vmatpush.msra.mxu0 %v166
  %1285 = vmatpush.msra.mxu0 %v165
  %1286 = vmatpush.msra.mxu0 %v164
  %1287 = vmatpush.msra.mxu0 %v163
  %1288 = vmatpush.msra.mxu0 %v162
  %1289 = vmatpush.msra.mxu0 %v161
  %1290 = vmatpush.msra.mxu0 %v160
  %1291 = vmatpush.msra.mxu0 %v159
  %1292 = vmatpush.msra.mxu0 %v158
  %1293 = vmatpush.msra.mxu0 %v157
  %1294 = vmatpush.msra.mxu0 %v156
  %1295 = vmatpush.msra.mxu0 %v155
  %1296 = vmatpush.msra.mxu0 %v154
  %1297 = vmatpush.msra.mxu0 %v153
  %1298 = vmatpush.msra.mxu0 %v152
  %1299 = vmatmul.f32.gmra.mxu0 %v1272
  %v1300 = vpop.f32.mrf.mxu0
  %v1301 = vadd.f32 0.0, %v1300
  %1302 = vdwg.mxu0
  %1303 = vmatpush.msra.mxu0 %v167
  %1304 = vmatpush.msra.mxu0 %v166
  %1305 = vmatpush.msra.mxu0 %v165
  %1306 = vmatpush.msra.mxu0 %v164
  %1307 = vmatpush.msra.mxu0 %v163
  %1308 = vmatpush.msra.mxu0 %v162
  %1309 = vmatpush.msra.mxu0 %v161
  %1310 = vmatpush.msra.mxu0 %v160
  %1311 = vmatpush.msra.mxu0 %v159
  %1312 = vmatpush.msra.mxu0 %v158
  %1313 = vmatpush.msra.mxu0 %v157
  %1314 = vmatpush.msra.mxu0 %v156
  %1315 = vmatpush.msra.mxu0 %v155
  %1316 = vmatpush.msra.mxu0 %v154
  %1317 = vmatpush.msra.mxu0 %v153
  %1318 = vmatpush.msra.mxu0 %v152
  %1319 = vmatmul.f32.gmra.mxu0 %v1282
  %v1320 = vpop.f32.mrf.mxu0
  %v1321 = vadd.f32 0.0, %v1320
  %1322 = vdwg.mxu0
  %v1323 = vmul.f32 %v1301, %v1301
  %v1324 = vsub.f32 %v1321, %v1323
  %v1325 = vmax.f32 %v1324, 0.0
  %v1326 = vadd.f32 %v1325, 1e-05
  %v1327 = vrsqrt.pop %v1326
  %v1328 = vmul.f32 %v1327, %v1326
  %v1329 = vmul.f32 %v1328, %v1327
  %v1330 = vmul.f32 0.5, %v1329
  %v1331 = vsub.f32 1.5, %v1330
  %v1332 = vmul.f32 %v1327, %v1331
  %vm1333 = vweird.f32 %v1326
  %vm1334 = vweird.f32 %v1327
  %vm1335 = vmor %vm1333, %vm1334
  %v1336 = vsel %vm1335, %v1327, %v1332
  %v1337 = vmul.f32 %v996, %v1336
  %v1338 = vmul.f32 %v1301, %v1337
  %v1340 = vrot.slane %v1338, 7
  %v1342 = vsub.f32 %v996, %v1340
  %v1343 = vperm.slane %v1337, 0
  %v1344 = vmul.f32 %v1220, %v1343
  %v1345 = vmul.f32 %v1221, %v1343
  %v1346 = vperm.slane %v1342, 1
  %v1347 = vadd.f32 %v1344, %v1346
  %v1348 = vadd.f32 %v1345, %v1346
  %v1349 = vmax.f32 %v1347, 0.0
  %v1350 = vmax.f32 %v1348, 0.0
  %1351 = vst [vmem:[#allocation3 + $0x1] sm:$0xff] %v1349
  %1352 = vst [vmem:[#allocation3 + $0x9] sm:$0xff] %v1350
  %v1353 = vmul.f32 %v1247, %v1343
  %v1354 = vmul.f32 %v1248, %v1343
  %v1355 = vadd.f32 %v1353, %v1346
  %v1356 = vadd.f32 %v1354, %v1346
  %v1357 = vmax.f32 %v1355, 0.0
  %v1358 = vmax.f32 %v1356, 0.0
  %1359 = vst [vmem:[#allocation3 + $0x13] sm:$0xff] %v1357
  %1360 = vst [vmem:[#allocation3 + $0x1b] sm:$0xff] %v1358
  %s1361 = scalar_lea.vmem [#allocation4], 192
  %v1362 = vld [vmem:[%s1361] sm:$0xf]
  %v1363 = vld [vmem:[%s1361 + $0x4] sm:$0xf]
  %v1364 = vld [vmem:[%s1361 + $0x8] sm:$0xf]
  %v1365 = vld [vmem:[%s1361 + $0xc] sm:$0xf]
  %v1366 = vld [vmem:[%s1361 + $0x10] sm:$0xf]
  %v1367 = vld [vmem:[%s1361 + $0x14] sm:$0xf]
  %v1368 = vld [vmem:[%s1361 + $0x18] sm:$0xf]
  %v1369 = vld [vmem:[%s1361 + $0x1c] sm:$0xf]
  %v1370 = vld [vmem:[%s1361 + $0x20] sm:$0xf]
  %v1371 = vld [vmem:[%s1361 + $0x24] sm:$0xf]
  %v1372 = vld [vmem:[%s1361 + $0x28] sm:$0xf]
  %v1373 = vld [vmem:[%s1361 + $0x2c] sm:$0xf]
  %v1374 = vld [vmem:[%s1361 + $0x30] sm:$0xf]
  %v1375 = vld [vmem:[%s1361 + $0x34] sm:$0xf]
  %v1376 = vld [vmem:[%s1361 + $0x38] sm:$0xf]
  %v1377 = vld [vmem:[%s1361 + $0x3c] sm:$0xf]
  %v1378 = vunpack.c.l.bf16 %v1362
  %v1379 = vunpack.c.l.bf16 %v1363
  %v1380 = vunpack.c.l.bf16 %v1364
  %v1381 = vunpack.c.l.bf16 %v1365
  %v1382 = vunpack.c.l.bf16 %v1366
  %v1383 = vunpack.c.l.bf16 %v1367
  %v1384 = vunpack.c.l.bf16 %v1368
  %v1385 = vunpack.c.l.bf16 %v1369
  %v1386 = vunpack.c.l.bf16 %v1370
  %v1387 = vunpack.c.l.bf16 %v1371
  %v1388 = vunpack.c.l.bf16 %v1372
  %v1389 = vunpack.c.l.bf16 %v1373
  %v1390 = vunpack.c.l.bf16 %v1374
  %v1391 = vunpack.c.l.bf16 %v1375
  %v1392 = vunpack.c.l.bf16 %v1376
  %v1393 = vunpack.c.l.bf16 %v1377
  %v1394 = vld [vmem:[#allocation3] sm:$0xff]
  %v1395 = vld [vmem:[#allocation3 + $0x8] sm:$0xff]
  %v1396 = vld [vmem:[#allocation3 + $0x12] sm:$0xff]
  %v1397 = vld [vmem:[#allocation3 + $0x1a] sm:$0xff]
  %s1398 = scalar_lea.vmem [#allocation4], 256
  %v1399 = vld [vmem:[%s1398] sm:$0xf]
  %v1400 = vld [vmem:[%s1398 + $0x4] sm:$0xf]
  %v1401 = vld [vmem:[%s1398 + $0x8] sm:$0xf]
  %v1402 = vld [vmem:[%s1398 + $0xc] sm:$0xf]
  %v1403 = vld [vmem:[%s1398 + $0x10] sm:$0xf]
  %v1404 = vld [vmem:[%s1398 + $0x14] sm:$0xf]
  %v1405 = vld [vmem:[%s1398 + $0x18] sm:$0xf]
  %v1406 = vld [vmem:[%s1398 + $0x1c] sm:$0xf]
  %v1407 = vld [vmem:[%s1398 + $0x20] sm:$0xf]
  %v1408 = vld [vmem:[%s1398 + $0x24] sm:$0xf]
  %v1409 = vld [vmem:[%s1398 + $0x28] sm:$0xf]
  %v1410 = vld [vmem:[%s1398 + $0x2c] sm:$0xf]
  %v1411 = vld [vmem:[%s1398 + $0x30] sm:$0xf]
  %v1412 = vld [vmem:[%s1398 + $0x34] sm:$0xf]
  %v1413 = vld [vmem:[%s1398 + $0x38] sm:$0xf]
  %v1414 = vld [vmem:[%s1398 + $0x3c] sm:$0xf]
  %v1415 = vunpack.c.l.bf16 %v1399
  %v1416 = vunpack.c.l.bf16 %v1400
  %v1417 = vunpack.c.l.bf16 %v1401
  %v1418 = vunpack.c.l.bf16 %v1402
  %v1419 = vunpack.c.l.bf16 %v1403
  %v1420 = vunpack.c.l.bf16 %v1404
  %v1421 = vunpack.c.l.bf16 %v1405
  %v1422 = vunpack.c.l.bf16 %v1406
  %v1423 = vunpack.c.l.bf16 %v1407
  %v1424 = vunpack.c.l.bf16 %v1408
  %v1425 = vunpack.c.l.bf16 %v1409
  %v1426 = vunpack.c.l.bf16 %v1410
  %v1427 = vunpack.c.l.bf16 %v1411
  %v1428 = vunpack.c.l.bf16 %v1412
  %v1429 = vunpack.c.l.bf16 %v1413
  %v1430 = vunpack.c.l.bf16 %v1414
  %v1431 = vld [vmem:[#allocation3 + $0x1] sm:$0xff]
  %v1432 = vld [vmem:[#allocation3 + $0x9] sm:$0xff]
  %1433 = vmatpush.msra.mxu0 %v1430
  %1434 = vmatpush.msra.mxu0 %v1429
  %1435 = vmatpush.msra.mxu0 %v1428
  %1436 = vmatpush.msra.mxu0 %v1427
  %1437 = vmatpush.msra.mxu0 %v1426
  %1438 = vmatpush.msra.mxu0 %v1425
  %1439 = vmatpush.msra.mxu0 %v1424
  %1440 = vmatpush.msra.mxu0 %v1423
  %1441 = vmatpush.msra.mxu0 %v1422
  %1442 = vmatpush.msra.mxu0 %v1421
  %1443 = vmatpush.msra.mxu0 %v1420
  %1444 = vmatpush.msra.mxu0 %v1419
  %1445 = vmatpush.msra.mxu0 %v1418
  %1446 = vmatpush.msra.mxu0 %v1417
  %1447 = vmatpush.msra.mxu0 %v1416
  %1448 = vmatpush.msra.mxu0 %v1415
  %1449 = vmatmul.f32.gmra.mxu0 %v1431
  %v1450 = vpop.f32.mrf.mxu0
  %v1451 = vadd.f32 0.0, %v1450
  %1452 = vmatmul.f32.gmra.mxu0 %v1432
  %v1453 = vpop.f32.mrf.mxu0
  %v1454 = vadd.f32 0.0, %v1453
  %1455 = vdwg.mxu0
  %1456 = vmatpush.msra.mxu0 %v1393
  %1457 = vmatpush.msra.mxu0 %v1392
  %1458 = vmatpush.msra.mxu0 %v1391
  %1459 = vmatpush.msra.mxu0 %v1390
  %1460 = vmatpush.msra.mxu0 %v1389
  %1461 = vmatpush.msra.mxu0 %v1388
  %1462 = vmatpush.msra.mxu0 %v1387
  %1463 = vmatpush.msra.mxu0 %v1386
  %1464 = vmatpush.msra.mxu0 %v1385
  %1465 = vmatpush.msra.mxu0 %v1384
  %1466 = vmatpush.msra.mxu0 %v1383
  %1467 = vmatpush.msra.mxu0 %v1382
  %1468 = vmatpush.msra.mxu0 %v1381
  %1469 = vmatpush.msra.mxu0 %v1380
  %1470 = vmatpush.msra.mxu0 %v1379
  %1471 = vmatpush.msra.mxu0 %v1378
  %1472 = vmatmul.f32.gmra.mxu0 %v1394
  %v1473 = vpop.f32.mrf.mxu0
  %v1474 = vadd.f32 %v1451, %v1473
  %1475 = vmatmul.f32.gmra.mxu0 %v1395
  %v1476 = vpop.f32.mrf.mxu0
  %v1477 = vadd.f32 %v1454, %v1476
  %1478 = vdwg.mxu0
  %v1479 = vld [vmem:[#allocation3 + $0x13] sm:$0xff]
  %v1480 = vld [vmem:[#allocation3 + $0x1b] sm:$0xff]
  %1481 = vmatpush.msra.mxu0 %v1430
  %1482 = vmatpush.msra.mxu0 %v1429
  %1483 = vmatpush.msra.mxu0 %v1428
  %1484 = vmatpush.msra.mxu0 %v1427
  %1485 = vmatpush.msra.mxu0 %v1426
  %1486 = vmatpush.msra.mxu0 %v1425
  %1487 = vmatpush.msra.mxu0 %v1424
  %1488 = vmatpush.msra.mxu0 %v1423
  %1489 = vmatpush.msra.mxu0 %v1422
  %1490 = vmatpush.msra.mxu0 %v1421
  %1491 = vmatpush.msra.mxu0 %v1420
  %1492 = vmatpush.msra.mxu0 %v1419
  %1493 = vmatpush.msra.mxu0 %v1418
  %1494 = vmatpush.msra.mxu0 %v1417
  %1495 = vmatpush.msra.mxu0 %v1416
  %1496 = vmatpush.msra.mxu0 %v1415
  %1497 = vmatmul.f32.gmra.mxu0 %v1479
  %v1498 = vpop.f32.mrf.mxu0
  %v1499 = vadd.f32 0.0, %v1498
  %1500 = vmatmul.f32.gmra.mxu0 %v1480
  %v1501 = vpop.f32.mrf.mxu0
  %v1502 = vadd.f32 0.0, %v1501
  %1503 = vdwg.mxu0
  %1504 = vmatpush.msra.mxu0 %v1393
  %1505 = vmatpush.msra.mxu0 %v1392
  %1506 = vmatpush.msra.mxu0 %v1391
  %1507 = vmatpush.msra.mxu0 %v1390
  %1508 = vmatpush.msra.mxu0 %v1389
  %1509 = vmatpush.msra.mxu0 %v1388
  %1510 = vmatpush.msra.mxu0 %v1387
  %1511 = vmatpush.msra.mxu0 %v1386
  %1512 = vmatpush.msra.mxu0 %v1385
  %1513 = vmatpush.msra.mxu0 %v1384
  %1514 = vmatpush.msra.mxu0 %v1383
  %1515 = vmatpush.msra.mxu0 %v1382
  %1516 = vmatpush.msra.mxu0 %v1381
  %1517 = vmatpush.msra.mxu0 %v1380
  %1518 = vmatpush.msra.mxu0 %v1379
  %1519 = vmatpush.msra.mxu0 %v1378
  %1520 = vmatmul.f32.gmra.mxu0 %v1396
  %v1521 = vpop.f32.mrf.mxu0
  %v1522 = vadd.f32 %v1499, %v1521
  %1523 = vmatmul.f32.gmra.mxu0 %v1397
  %v1524 = vpop.f32.mrf.mxu0
  %v1525 = vadd.f32 %v1502, %v1524
  %1526 = vdwg.mxu0
  %s1527 = scalar_lea.vmem [#allocation4], 320
  %v1528 = vld [vmem:[%s1527] sm:$0xf]
  %v1529 = vld [vmem:[%s1527 + $0x4] sm:$0xf]
  %v1530 = vld [vmem:[%s1527 + $0x8] sm:$0xf]
  %v1531 = vld [vmem:[%s1527 + $0xc] sm:$0xf]
  %v1532 = vld [vmem:[%s1527 + $0x10] sm:$0xf]
  %v1533 = vld [vmem:[%s1527 + $0x14] sm:$0xf]
  %v1534 = vld [vmem:[%s1527 + $0x18] sm:$0xf]
  %v1535 = vld [vmem:[%s1527 + $0x1c] sm:$0xf]
  %v1536 = vld [vmem:[%s1527 + $0x20] sm:$0xf]
  %v1537 = vld [vmem:[%s1527 + $0x24] sm:$0xf]
  %v1538 = vld [vmem:[%s1527 + $0x28] sm:$0xf]
  %v1539 = vld [vmem:[%s1527 + $0x2c] sm:$0xf]
  %v1540 = vld [vmem:[%s1527 + $0x30] sm:$0xf]
  %v1541 = vld [vmem:[%s1527 + $0x34] sm:$0xf]
  %v1542 = vld [vmem:[%s1527 + $0x38] sm:$0xf]
  %v1543 = vld [vmem:[%s1527 + $0x3c] sm:$0xf]
  %v1544 = vunpack.c.l.bf16 %v1528
  %v1545 = vunpack.c.l.bf16 %v1529
  %v1546 = vunpack.c.l.bf16 %v1530
  %v1547 = vunpack.c.l.bf16 %v1531
  %v1548 = vunpack.c.l.bf16 %v1532
  %v1549 = vunpack.c.l.bf16 %v1533
  %v1550 = vunpack.c.l.bf16 %v1534
  %v1551 = vunpack.c.l.bf16 %v1535
  %v1552 = vunpack.c.l.bf16 %v1536
  %v1553 = vunpack.c.l.bf16 %v1537
  %v1554 = vunpack.c.l.bf16 %v1538
  %v1555 = vunpack.c.l.bf16 %v1539
  %v1556 = vunpack.c.l.bf16 %v1540
  %v1557 = vunpack.c.l.bf16 %v1541
  %v1558 = vunpack.c.l.bf16 %v1542
  %v1559 = vunpack.c.l.bf16 %v1543
  %v1560 = vld [vmem:[#allocation3 + $0x2] sm:$0xff]
  %v1561 = vld [vmem:[#allocation3 + $0xa] sm:$0xff]
  %1562 = vmatpush.msra.mxu0 %v1559
  %1563 = vmatpush.msra.mxu0 %v1558
  %1564 = vmatpush.msra.mxu0 %v1557
  %1565 = vmatpush.msra.mxu0 %v1556
  %1566 = vmatpush.msra.mxu0 %v1555
  %1567 = vmatpush.msra.mxu0 %v1554
  %1568 = vmatpush.msra.mxu0 %v1553
  %1569 = vmatpush.msra.mxu0 %v1552
  %1570 = vmatpush.msra.mxu0 %v1551
  %1571 = vmatpush.msra.mxu0 %v1550
  %1572 = vmatpush.msra.mxu0 %v1549
  %1573 = vmatpush.msra.mxu0 %v1548
  %1574 = vmatpush.msra.mxu0 %v1547
  %1575 = vmatpush.msra.mxu0 %v1546
  %1576 = vmatpush.msra.mxu0 %v1545
  %1577 = vmatpush.msra.mxu0 %v1544
  %1578 = vmatmul.f32.gmra.mxu0 %v1560
  %v1579 = vpop.f32.mrf.mxu0
  %v1580 = vadd.f32 0.0, %v1579
  %1581 = vmatmul.f32.gmra.mxu0 %v1561
  %v1582 = vpop.f32.mrf.mxu0
  %v1583 = vadd.f32 0.0, %v1582
  %1584 = vdwg.mxu0
  %v1585 = vadd.f32 %v1474, %v1580
  %v1586 = vadd.f32 %v1477, %v1583
  %v1587 = vld [vmem:[#allocation3 + $0x14] sm:$0xff]
  %v1588 = vld [vmem:[#allocation3 + $0x1c] sm:$0xff]
  %1589 = vmatpush.msra.mxu0 %v1559
  %1590 = vmatpush.msra.mxu0 %v1558
  %1591 = vmatpush.msra.mxu0 %v1557
  %1592 = vmatpush.msra.mxu0 %v1556
  %1593 = vmatpush.msra.mxu0 %v1555
  %1594 = vmatpush.msra.mxu0 %v1554
  %1595 = vmatpush.msra.mxu0 %v1553
  %1596 = vmatpush.msra.mxu0 %v1552
  %1597 = vmatpush.msra.mxu0 %v1551
  %1598 = vmatpush.msra.mxu0 %v1550
  %1599 = vmatpush.msra.mxu0 %v1549
  %1600 = vmatpush.msra.mxu0 %v1548
  %1601 = vmatpush.msra.mxu0 %v1547
  %1602 = vmatpush.msra.mxu0 %v1546
  %1603 = vmatpush.msra.mxu0 %v1545
  %1604 = vmatpush.msra.mxu0 %v1544
  %1605 = vmatmul.f32.gmra.mxu0 %v1587
  %v1606 = vpop.f32.mrf.mxu0
  %v1607 = vadd.f32 0.0, %v1606
  %1608 = vmatmul.f32.gmra.mxu0 %v1588
  %v1609 = vpop.f32.mrf.mxu0
  %v1610 = vadd.f32 0.0, %v1609
  %1611 = vdwg.mxu0
  %v1612 = vadd.f32 %v1522, %v1607
  %v1613 = vadd.f32 %v1525, %v1610
  %v1614 = vld [vmem:[#allocation2 + $0x1] sm:$0xff]
  %v1615 = vld [vmem:[#allocation2 + $0x9] sm:$0xff]
  %v1616 = vadd.f32 %v1585, %v1614
  %v1617 = vadd.f32 %v1586, %v1615
  %v1618 = vld [vmem:[#allocation2 + $0x13] sm:$0xff]
  %v1619 = vld [vmem:[#allocation2 + $0x1b] sm:$0xff]
  %v1620 = vadd.f32 %v1612, %v1618
  %v1621 = vadd.f32 %v1613, %v1619
  %v1622 = vadd.f32 %v1616, %v1617
  %v1623 = vrot.slane %v1622, 4
  %v1624 = vadd.f32 %v1622, %v1623
  %v1625 = vrot.slane %v1624, 2
  %v1626 = vadd.f32 %v1624, %v1625
  %v1627 = vrot.slane %v1626, 1
  %v1628 = vadd.f32 %v1626, %v1627
  %v1629 = vmul.f32 %v1616, %v1616
  %v1630 = vmul.f32 %v1617, %v1617
  %v1631 = vadd.f32 %v1629, %v1630
  %v1632 = vrot.slane %v1631, 4
  %v1633 = vadd.f32 %v1631, %v1632
  %v1634 = vrot.slane %v1633, 2
  %v1635 = vadd.f32 %v1633, %v1634
  %v1636 = vrot.slane %v1635, 1
  %v1637 = vadd.f32 %v1635, %v1636
  %v1638 = vadd.f32 %v1620, %v1621
  %v1639 = vrot.slane %v1638, 4
  %v1640 = vadd.f32 %v1638, %v1639
  %v1641 = vrot.slane %v1640, 2
  %v1642 = vadd.f32 %v1640, %v1641
  %v1643 = vrot.slane %v1642, 1
  %v1644 = vadd.f32 %v1642, %v1643
  %v1645 = vadd.f32 %v1628, %v1644
  %v1646 = vmul.f32 %v1620, %v1620
  %v1647 = vmul.f32 %v1621, %v1621
  %v1648 = vadd.f32 %v1646, %v1647
  %v1649 = vrot.slane %v1648, 4
  %v1650 = vadd.f32 %v1648, %v1649
  %v1651 = vrot.slane %v1650, 2
  %v1652 = vadd.f32 %v1650, %v1651
  %v1653 = vrot.slane %v1652, 1
  %v1654 = vadd.f32 %v1652, %v1653
  %v1655 = vadd.f32 %v1637, %v1654
  %1656 = vmatpush.msra.mxu0 %v167
  %1657 = vmatpush.msra.mxu0 %v166
  %1658 = vmatpush.msra.mxu0 %v165
  %1659 = vmatpush.msra.mxu0 %v164
  %1660 = vmatpush.msra.mxu0 %v163
  %1661 = vmatpush.msra.mxu0 %v162
  %1662 = vmatpush.msra.mxu0 %v161
  %1663 = vmatpush.msra.mxu0 %v160
  %1664 = vmatpush.msra.mxu0 %v159
  %1665 = vmatpush.msra.mxu0 %v158
  %1666 = vmatpush.msra.mxu0 %v157
  %1667 = vmatpush.msra.mxu0 %v156
  %1668 = vmatpush.msra.mxu0 %v155
  %1669 = vmatpush.msra.mxu0 %v154
  %1670 = vmatpush.msra.mxu0 %v153
  %1671 = vmatpush.msra.mxu0 %v152
  %1672 = vmatmul.f32.gmra.mxu0 %v1645
  %v1673 = vpop.f32.mrf.mxu0
  %v1674 = vadd.f32 0.0, %v1673
  %1675 = vdwg.mxu0
  %1676 = vmatpush.msra.mxu0 %v167
  %1677 = vmatpush.msra.mxu0 %v166
  %1678 = vmatpush.msra.mxu0 %v165
  %1679 = vmatpush.msra.mxu0 %v164
  %1680 = vmatpush.msra.mxu0 %v163
  %1681 = vmatpush.msra.mxu0 %v162
  %1682 = vmatpush.msra.mxu0 %v161
  %1683 = vmatpush.msra.mxu0 %v160
  %1684 = vmatpush.msra.mxu0 %v159
  %1685 = vmatpush.msra.mxu0 %v158
  %1686 = vmatpush.msra.mxu0 %v157
  %1687 = vmatpush.msra.mxu0 %v156
  %1688 = vmatpush.msra.mxu0 %v155
  %1689 = vmatpush.msra.mxu0 %v154
  %1690 = vmatpush.msra.mxu0 %v153
  %1691 = vmatpush.msra.mxu0 %v152
  %1692 = vmatmul.f32.gmra.mxu0 %v1655
  %v1693 = vpop.f32.mrf.mxu0
  %v1694 = vadd.f32 0.0, %v1693
  %1695 = vdwg.mxu0
  %v1696 = vmul.f32 %v1674, %v1674
  %v1697 = vsub.f32 %v1694, %v1696
  %v1698 = vmax.f32 %v1697, 0.0
  %v1699 = vadd.f32 %v1698, 1e-05
  %v1700 = vrsqrt.pop %v1699
  %v1701 = vmul.f32 %v1700, %v1699
  %v1702 = vmul.f32 %v1701, %v1700
  %v1703 = vmul.f32 0.5, %v1702
  %v1704 = vsub.f32 1.5, %v1703
  %v1705 = vmul.f32 %v1700, %v1704
  %vm1706 = vweird.f32 %v1699
  %vm1707 = vweird.f32 %v1700
  %vm1708 = vmor %vm1706, %vm1707
  %v1709 = vsel %vm1708, %v1700, %v1705
  %v1711 = vrot.slane %v1709, 6
  %v1713 = vmul.f32 %v996, %v1711
  %v1715 = vrot.slane %v1713, 2
  %v1717 = vmul.f32 %v1674, %v1715
  %v1719 = vrot.slane %v1717, 5
  %v1721 = vsub.f32 %v996, %v1719
  %v1722 = vperm.slane %v1713, 2
  %v1723 = vmul.f32 %v1616, %v1722
  %v1724 = vmul.f32 %v1617, %v1722
  %v1725 = vperm.slane %v1721, 3
  %v1726 = vadd.f32 %v1723, %v1725
  %v1727 = vadd.f32 %v1724, %v1725
  %v1728 = vmax.f32 %v1726, 0.0
  %v1729 = vmax.f32 %v1727, 0.0
  %1730 = vst [vmem:[%s7] sm:$0xff] %v1728
  %1731 = vst [vmem:[%s7 + $0x8] sm:$0xff] %v1729
  %v1732 = vmul.f32 %v1620, %v1722
  %v1733 = vmul.f32 %v1621, %v1722
  %v1734 = vadd.f32 %v1732, %v1725
  %v1735 = vadd.f32 %v1733, %v1725
  %v1736 = vmax.f32 %v1734, 0.0
  %v1737 = vmax.f32 %v1735, 0.0
  %1738 = vst [vmem:[%s7 + $0x10] sm:$0xff] %v1736
  %1739 = vst [vmem:[%s7 + $0x18] sm:$0xff] %v1737
  // Predicated region
  $region45: #{_lambda_.1} parent=0 // pred_check
    _
  $region46: #{_lambda_.1} parent=0 // pred_check_branch
    %1741 = sbr.rel (0) target = $region48
  $region47: #{_lambda_.1} parent=0 // pred_region
    _
  $region48: #{_lambda_.1} parent=0 // pred_fallthru
    _
  // Predicated region
  $region49: #{_lambda_.1} parent=0 // pred_check
    _
  $region50: #{_lambda_.1} parent=0 // pred_check_branch
    %1743 = sbr.rel (0) target = $region52
  $region51: #{_lambda_.1} parent=0 // pred_region
    _
  $region52: #{_lambda_.1} parent=0 // pred_fallthru
    _
  %1744 = vsyncmov [#allocation5]
  %s1745 = vpop.sfrf %1744
  %p1746 = scmp.eq.s32.totalorder %s1745, 0
  %p1747 = pneg %p1746
  %1749 = shalt.err (%p1747)

</llo_original>
